<compile_context>
chip_gen: v7x
topology: tpu7x:2x2x1
jax: 0.10.0
libtpu: 0.0.40
codegen_flags: <defaults>
</compile_context>

<pallas_src>
import jax
import jax.numpy as jnp
from jax import lax
from jax.experimental import pallas as pl
from jax.experimental.pallas import tpu as pltpu


# ----------------------------------------------------------------------------
# Fused kernel (one batch element per grid step)
#   xpad_ref : (1, H+2, (W+2)*Cin)        zero-padded input, channel-packed lanes
#   t1_ref   : (3, (W+2)*Cin, (W+2)*Cout) banded conv1 weights (BN1 scale folded,
#                                         W-halo output columns zeroed)
#   b1_ref   : (1, (W+2)*Cout)            folded BN1 bias, zero in halo cols
#   t2_ref   : (3, (W+2)*Cout, W*Cout)    banded conv2 weights (BN2 scale folded)
#   tsc_ref  : ((W+2)*Cin, W*Cout)        banded 1x1 shortcut (BNsc scale folded)
#   bias2_ref: (1, W*Cout)                b2 + bsc (merged biases)
#   out_ref  : (1, H, W*Cout)             residual-branch result (lane-dense)
#   y1pad_ref: VMEM (H+2, (W+2)*Cout)     intermediate y1 with halo, VMEM-only
# ----------------------------------------------------------------------------
def _fused_block_kernel(xpad_ref, t1_ref, b1_ref, t2_ref, tsc_ref, bias2_ref,
                        out_ref, y1pad_ref):
    _, Hp2, _ = xpad_ref.shape
    H = Hp2 - 2
    WpCout = t1_ref.shape[-1]                            # (W+2)*Cout

    xslab = xpad_ref[0]                                  # (H+2, (W+2)*Cin)
    x0 = xslab[0:H, :]
    x1 = xslab[1:H + 1, :]                               # reused by the shortcut
    x2 = xslab[2:H + 2, :]

    # ---- conv1 (3 banded matmuls, BN1 scale pre-folded) + bias + ReLU ------
    acc1 = jnp.dot(x0, t1_ref[0], preferred_element_type=jnp.float32)
    acc1 += jnp.dot(x1, t1_ref[1], preferred_element_type=jnp.float32)
    acc1 += jnp.dot(x2, t1_ref[2], preferred_element_type=jnp.float32)
    y1 = jnp.maximum(acc1 + b1_ref[...], 0.0)            # (H, (W+2)*Cout)

    # Keep y1 resident in VMEM with a zero halo (W-halo columns are already zero
    # because those t1/b1 columns are zero; only H-halo rows need explicit zeros).
    zero_row = jnp.zeros((1, WpCout), jnp.float32)
    y1pad_ref[0:1, :] = zero_row
    y1pad_ref[1:H + 1, :] = y1
    y1pad_ref[H + 1:H + 2, :] = zero_row

    # ---- shortcut: banded 1x1 conv (BNsc scale pre-folded), reuses x1 -------
    sc = jnp.dot(x1, tsc_ref[...], preferred_element_type=jnp.float32)

    # ---- conv2 (3 banded matmuls, BN2 scale pre-folded) + shortcut + ReLU ---
    y1slab = y1pad_ref[...]                              # (H+2, (W+2)*Cout)
    acc2 = jnp.dot(y1slab[0:H, :], t2_ref[0], preferred_element_type=jnp.float32)
    acc2 += jnp.dot(y1slab[1:H + 1, :], t2_ref[1], preferred_element_type=jnp.float32)
    acc2 += jnp.dot(y1slab[2:H + 2, :], t2_ref[2], preferred_element_type=jnp.float32)

    out_ref[0] = jnp.maximum(acc2 + sc + bias2_ref[...], 0.0)


# ----------------------------------------------------------------------------
# Banded (block-Toeplitz) weight construction: conv along W as a single matmul.
# ----------------------------------------------------------------------------
def _band_weight(taps_dx, W, *, pad_out):
    """taps_dx: (3, Cin, Cout) taps for one kernel row dy, indexed by dx.

    Returns T so that for X of shape (H, (W+2)*Cin) holding one padded row-slab,
    (X @ T)[h, w'*Cout + o] is this kernel row's contribution to output pixel w
    (w' = w + 1 if pad_out else w).  When pad_out, the border output columns may
    receive spurious taps; they are zeroed downstream (zeroed weight columns).
    """
    _, Cin, Cout = taps_dx.shape
    n_in = W + 2
    n_out = W + 2 if pad_out else W
    col0 = 1 if pad_out else 0
    t = jnp.zeros((n_in, n_out, Cin, Cout), taps_dx.dtype)
    for dx in range(3):
        sel = jnp.eye(n_in, n_out, k=col0 - dx, dtype=taps_dx.dtype)
        t = t + sel[:, :, None, None] * taps_dx[dx][None, None]
    return t.transpose(0, 2, 1, 3).reshape(n_in * Cin, n_out * Cout)


def _band_weight_1x1(w_io, W):
    """w_io: (Cin, Cout). Banded 1x1 conv applied to the dy=1 padded row-slab."""
    Cin, Cout = w_io.shape
    sel = jnp.eye(W + 2, W, k=-1, dtype=w_io.dtype)
    t = sel[:, :, None, None] * w_io[None, None]
    return t.transpose(0, 2, 1, 3).reshape((W + 2) * Cin, W * Cout)


# ----------------------------------------------------------------------------
# Wrapper: NCHW in / NCHW out, eval-mode BN folded into weights and biases.
# params = (w1[Cout,Cin,3,3], s1[Cout], b1[Cout], w2[Cout,Cout,3,3], s2, b2,
#           wsc[Cout,Cin,1,1], ssc, bsc)
# ----------------------------------------------------------------------------
@jax.jit
def basic_block_rense_ensemble(x_nchw, params):
    w1, s1, b1, w2, s2, b2, wsc, ssc, bsc = params
    N, Cin, H, W = x_nchw.shape
    Cout = w1.shape[0]

    x_nhwc = jnp.transpose(x_nchw, (0, 2, 3, 1)).astype(jnp.float32)
    xpad = jnp.pad(x_nhwc, ((0, 0), (1, 1), (1, 1), (0, 0)))
    xpad_p = xpad.reshape(N, H + 2, (W + 2) * Cin)

    # Banded conv weights (tiny; constant-folded by XLA per param set).
    w1_hwio = jnp.transpose(w1, (2, 3, 1, 0))            # (3,3,Cin,Cout)
    w2_hwio = jnp.transpose(w2, (2, 3, 1, 0))            # (3,3,Cout,Cout)
    t1 = jnp.stack([_band_weight(w1_hwio[dy], W, pad_out=True) for dy in range(3)])
    t2 = jnp.stack([_band_weight(w2_hwio[dy], W, pad_out=False) for dy in range(3)])
    tsc = _band_weight_1x1(wsc[:, :, 0, 0].T, W)

    # Fold BN scales into the banded weight columns; zero conv1's W-halo columns.
    zc = jnp.zeros((Cout,), jnp.float32)
    s1_cols = jnp.concatenate([zc, jnp.tile(s1, W), zc])          # ((W+2)*Cout,)
    t1 = t1 * s1_cols[None, None, :]
    t2 = t2 * jnp.tile(s2, W)[None, None, :]
    tsc = tsc * jnp.tile(ssc, W)[None, :]

    # Biases in the packed lane layout (conv1 halo cols zero; b2+bsc merged).
    b1t = jnp.concatenate([zc, jnp.tile(b1, W), zc]).reshape(1, (W + 2) * Cout)
    bias2 = jnp.tile(b2 + bsc, W).reshape(1, W * Cout)

    def resident(arr):  # whole-array operand, stays resident across the batch grid
        zeros = (0,) * arr.ndim
        return pl.BlockSpec(arr.shape, lambda n, _z=zeros: _z)

    res_p = pl.pallas_call(
        _fused_block_kernel,
        out_shape=jax.ShapeDtypeStruct((N, H, W * Cout), jnp.float32),
        grid_spec=pltpu.PrefetchScalarGridSpec(
            num_scalar_prefetch=0,
            grid=(N,),
            in_specs=[
                pl.BlockSpec((1, H + 2, (W + 2) * Cin), lambda n: (n, 0, 0)),
                resident(t1), resident(b1t),
                resident(t2), resident(tsc), resident(bias2),
            ],
            out_specs=pl.BlockSpec((1, H, W * Cout), lambda n: (n, 0, 0)),
            scratch_shapes=[pltpu.VMEM((H + 2, (W + 2) * Cout), jnp.float32)],
        ),
        compiler_params=pltpu.CompilerParams(
            dimension_semantics=("parallel",),
            vmem_limit_bytes=32 * 1024 * 1024,
        ),
    )(xpad_p, t1, b1t, t2, tsc, bias2)

    res = res_p.reshape(N, H, W, Cout)
    # Concat + NCHW conversion fuse into a single XLA output pass.
    out_nhwc = jnp.concatenate([x_nhwc, res], axis=-1)
    return jnp.transpose(out_nhwc, (0, 3, 1, 2))


# ----------------------------------------------------------------------------
# Deterministic parameter construction (shapes from the nn.Module __init__)
# ----------------------------------------------------------------------------
def make_params(key, in_channels, growth_rate, eps=1e-5):
    Cin, Cout = in_channels, growth_rate
    ks = jax.random.split(key, 12)

    def bn_fold(kg, kb, km, kv, c):
        gamma = 0.5 + jax.random.uniform(kg, (c,), jnp.float32)      # > 0
        beta = 0.1 * jax.random.normal(kb, (c,), jnp.float32)
        mean = 0.1 * jax.random.normal(km, (c,), jnp.float32)
        var = 0.5 + jax.random.uniform(kv, (c,), jnp.float32)        # > 0
        scale = gamma / jnp.sqrt(var + eps)
        bias = beta - mean * scale
        return scale, bias

    w1 = 0.1 * jax.random.normal(ks[0], (Cout, Cin, 3, 3), jnp.float32)
    w2 = 0.1 * jax.random.normal(ks[1], (Cout, Cout, 3, 3), jnp.float32)
    wsc = 0.1 * jax.random.normal(ks[2], (Cout, Cin, 1, 1), jnp.float32)

    s1, b1 = bn_fold(ks[3], ks[4], ks[5], ks[6], Cout)
    s2, b2 = bn_fold(ks[7], ks[8], ks[9], ks[10], Cout)
    ssc, bsc = bn_fold(*jax.random.split(ks[11], 4), Cout)

    return (w1, s1, b1, w2, s2, b2, wsc, ssc, bsc)


# ----------------------------------------------------------------------------
# Pure-JAX reference (lax.conv) for correctness checking
# ----------------------------------------------------------------------------
def reference(x_nchw, params):
    w1, s1, b1, w2, s2, b2, wsc, ssc, bsc = params

    def conv(x, w, pad):
        return lax.conv_general_dilated(
            x, w, window_strides=(1, 1), padding=[(pad, pad), (pad, pad)],
            dimension_numbers=("NCHW", "OIHW", "NCHW"))

    def bn(x, s, b):
        return x * s.reshape(1, -1, 1, 1) + b.reshape(1, -1, 1, 1)

    r = conv(x_nchw, w1, 1)
    r = jnp.maximum(bn(r, s1, b1), 0.0)
    r = conv(r, w2, 1)
    r = bn(r, s2, b2)
    sc = bn(conv(x_nchw, wsc, 0), ssc, bsc)
    return jnp.concatenate([x_nchw, jnp.maximum(r + sc, 0.0)], axis=1)


if __name__ == "__main__":
    N, Cin, H, W = 2, 4, 16, 16
    growth_rate = 8

    key = jax.random.PRNGKey(0)
    kx, kp = jax.random.split(key)
    x = jax.random.normal(kx, (N, Cin, H, W), jnp.float32)

    params = make_params(kp, Cin, growth_rate)

    out = jax.block_until_ready(basic_block_rense_ensemble(x, params))
    assert out.shape == (N, Cin + growth_rate, H, W), out.shape

    ref = reference(x, params)
    err = float(jnp.max(jnp.abs(out - ref)))
    assert jnp.allclose(out, ref, atol=1e-4, rtol=1e-4), err

    print("KERNEL_OK")
</pallas_src>

<mosaic_0001>
module attributes {stable_mosaic.version = 11 : i64} {
  func.func @_fused_block_kernel(%arg0: i32, %arg1: memref<1x18x72xf32, #tpu.memory_space<vmem>>, %arg2: memref<3x72x144xf32, #tpu.memory_space<vmem>>, %arg3: memref<1x144xf32, #tpu.memory_space<vmem>>, %arg4: memref<3x144x128xf32, #tpu.memory_space<vmem>>, %arg5: memref<72x128xf32, #tpu.memory_space<vmem>>, %arg6: memref<1x128xf32, #tpu.memory_space<vmem>>, %arg7: memref<1x16x128xf32, #tpu.memory_space<vmem>>, %arg8: memref<18x144xf32, #tpu.memory_space<vmem>>) attributes {dimension_semantics = [#tpu.dimension_semantics<parallel>], iteration_bounds = array<i64: 2>, scalar_prefetch = 0 : i64, scratch_operands = 1 : i64, tpu.core_type = #tpu.core_type<tc>, window_params = [{transform_indices = @transform_0, window_bounds = array<i64: 1, 18, 72>}, {pipeline_mode = #tpu.pipeline_mode<synchronous>, transform_indices = @transform_1, window_bounds = array<i64: 3, 72, 144>}, {pipeline_mode = #tpu.pipeline_mode<synchronous>, transform_indices = @transform_2, window_bounds = array<i64: 1, 144>}, {pipeline_mode = #tpu.pipeline_mode<synchronous>, transform_indices = @transform_3, window_bounds = array<i64: 3, 144, 128>}, {pipeline_mode = #tpu.pipeline_mode<synchronous>, transform_indices = @transform_4, window_bounds = array<i64: 72, 128>}, {pipeline_mode = #tpu.pipeline_mode<synchronous>, transform_indices = @transform_5, window_bounds = array<i64: 1, 128>}, {transform_indices = @transform_6, window_bounds = array<i64: 1, 16, 128>}]} {
    %c0 = arith.constant 0 : index
    %c0_0 = arith.constant 0 : index
    %c0_1 = arith.constant 0 : index
    %0 = vector.load %arg1[%c0, %c0_0, %c0_1] : memref<1x18x72xf32, #tpu.memory_space<vmem>>, vector<1x18x72xf32>
    %1 = vector.shape_cast %0 : vector<1x18x72xf32> to vector<18x72xf32>
    %2 = vector.extract_strided_slice %1 {offsets = [0, 0], sizes = [16, 72], strides = [1, 1]} : vector<18x72xf32> to vector<16x72xf32>
    %3 = vector.extract_strided_slice %1 {offsets = [1, 0], sizes = [16, 72], strides = [1, 1]} : vector<18x72xf32> to vector<16x72xf32>
    %4 = vector.extract_strided_slice %1 {offsets = [2, 0], sizes = [16, 72], strides = [1, 1]} : vector<18x72xf32> to vector<16x72xf32>
    %c0_2 = arith.constant 0 : index
    %c0_3 = arith.constant 0 : index
    %c0_4 = arith.constant 0 : index
    %5 = vector.load %arg2[%c0_2, %c0_3, %c0_4] : memref<3x72x144xf32, #tpu.memory_space<vmem>>, vector<1x72x144xf32>
    %6 = vector.shape_cast %5 : vector<1x72x144xf32> to vector<72x144xf32>
    %cst = arith.constant dense<0.000000e+00> : vector<16x144xf32>
    %7 = tpu.matmul %2, %6, %cst {dimension_numbers = #tpu.dot_dimension_numbers<[1], [0], [0], [1], [0, 0, 1, 1], [], []>} : vector<16x72xf32>, vector<72x144xf32>, vector<16x144xf32> -> vector<16x144xf32>
    %c1 = arith.constant 1 : index
    %c0_5 = arith.constant 0 : index
    %c0_6 = arith.constant 0 : index
    %8 = vector.load %arg2[%c1, %c0_5, %c0_6] : memref<3x72x144xf32, #tpu.memory_space<vmem>>, vector<1x72x144xf32>
    %9 = vector.shape_cast %8 : vector<1x72x144xf32> to vector<72x144xf32>
    %cst_7 = arith.constant dense<0.000000e+00> : vector<16x144xf32>
    %10 = tpu.matmul %3, %9, %cst_7 {dimension_numbers = #tpu.dot_dimension_numbers<[1], [0], [0], [1], [0, 0, 1, 1], [], []>} : vector<16x72xf32>, vector<72x144xf32>, vector<16x144xf32> -> vector<16x144xf32>
    %11 = arith.addf %7, %10 : vector<16x144xf32>
    %c2 = arith.constant 2 : index
    %c0_8 = arith.constant 0 : index
    %c0_9 = arith.constant 0 : index
    %12 = vector.load %arg2[%c2, %c0_8, %c0_9] : memref<3x72x144xf32, #tpu.memory_space<vmem>>, vector<1x72x144xf32>
    %13 = vector.shape_cast %12 : vector<1x72x144xf32> to vector<72x144xf32>
    %cst_10 = arith.constant dense<0.000000e+00> : vector<16x144xf32>
    %14 = tpu.matmul %4, %13, %cst_10 {dimension_numbers = #tpu.dot_dimension_numbers<[1], [0], [0], [1], [0, 0, 1, 1], [], []>} : vector<16x72xf32>, vector<72x144xf32>, vector<16x144xf32> -> vector<16x144xf32>
    %15 = arith.addf %11, %14 : vector<16x144xf32>
    %c0_11 = arith.constant 0 : index
    %c0_12 = arith.constant 0 : index
    %16 = vector.load %arg3[%c0_11, %c0_12] : memref<1x144xf32, #tpu.memory_space<vmem>>, vector<1x144xf32>
    %17 = vector.broadcast %16 : vector<1x144xf32> to vector<16x144xf32>
    %18 = arith.addf %15, %17 : vector<16x144xf32>
    %cst_13 = arith.constant 0.000000e+00 : f32
    %19 = vector.broadcast %cst_13 : f32 to vector<16x144xf32>
    %20 = arith.maximumf %18, %19 : vector<16x144xf32>
    %cst_14 = arith.constant 0.000000e+00 : f32
    %21 = vector.broadcast %cst_14 : f32 to vector<1x144xf32>
    %c0_15 = arith.constant 0 : index
    %c0_16 = arith.constant 0 : index
    %22 = vector.load %arg8[%c0_15, %c0_16] : memref<18x144xf32, #tpu.memory_space<vmem>>, vector<1x144xf32>
    tpu.vector_store %arg8[%c0_15, %c0_16], %21 {strides = array<i32>} : memref<18x144xf32, #tpu.memory_space<vmem>>, vector<1x144xf32>,
    %c1_17 = arith.constant 1 : index
    %c0_18 = arith.constant 0 : index
    %23 = vector.load %arg8[%c1_17, %c0_18] : memref<18x144xf32, #tpu.memory_space<vmem>>, vector<16x144xf32>
    tpu.vector_store %arg8[%c1_17, %c0_18], %20 {strides = array<i32>} : memref<18x144xf32, #tpu.memory_space<vmem>>, vector<16x144xf32>,
    %c17 = arith.constant 17 : index
    %c0_19 = arith.constant 0 : index
    %24 = vector.load %arg8[%c17, %c0_19] : memref<18x144xf32, #tpu.memory_space<vmem>>, vector<1x144xf32>
    tpu.vector_store %arg8[%c17, %c0_19], %21 {strides = array<i32>} : memref<18x144xf32, #tpu.memory_space<vmem>>, vector<1x144xf32>,
    %c0_20 = arith.constant 0 : index
    %c0_21 = arith.constant 0 : index
    %25 = vector.load %arg5[%c0_20, %c0_21] : memref<72x128xf32, #tpu.memory_space<vmem>>, vector<72x128xf32>
    %cst_22 = arith.constant dense<0.000000e+00> : vector<16x128xf32>
    %26 = tpu.matmul %3, %25, %cst_22 {dimension_numbers = #tpu.dot_dimension_numbers<[1], [0], [0], [1], [0, 0, 1, 1], [], []>} : vector<16x72xf32>, vector<72x128xf32>, vector<16x128xf32> -> vector<16x128xf32>
    %c0_23 = arith.constant 0 : index
    %c0_24 = arith.constant 0 : index
    %27 = vector.load %arg8[%c0_23, %c0_24] : memref<18x144xf32, #tpu.memory_space<vmem>>, vector<18x144xf32>
    %28 = vector.extract_strided_slice %27 {offsets = [0, 0], sizes = [16, 144], strides = [1, 1]} : vector<18x144xf32> to vector<16x144xf32>
    %c0_25 = arith.constant 0 : index
    %c0_26 = arith.constant 0 : index
    %c0_27 = arith.constant 0 : index
    %29 = vector.load %arg4[%c0_25, %c0_26, %c0_27] : memref<3x144x128xf32, #tpu.memory_space<vmem>>, vector<1x144x128xf32>
    %30 = vector.shape_cast %29 : vector<1x144x128xf32> to vector<144x128xf32>
    %cst_28 = arith.constant dense<0.000000e+00> : vector<16x128xf32>
    %31 = tpu.matmul %28, %30, %cst_28 {dimension_numbers = #tpu.dot_dimension_numbers<[1], [0], [0], [1], [0, 0, 1, 1], [], []>} : vector<16x144xf32>, vector<144x128xf32>, vector<16x128xf32> -> vector<16x128xf32>
    %32 = vector.extract_strided_slice %27 {offsets = [1, 0], sizes = [16, 144], strides = [1, 1]} : vector<18x144xf32> to vector<16x144xf32>
    %c1_29 = arith.constant 1 : index
    %c0_30 = arith.constant 0 : index
    %c0_31 = arith.constant 0 : index
    %33 = vector.load %arg4[%c1_29, %c0_30, %c0_31] : memref<3x144x128xf32, #tpu.memory_space<vmem>>, vector<1x144x128xf32>
    %34 = vector.shape_cast %33 : vector<1x144x128xf32> to vector<144x128xf32>
    %cst_32 = arith.constant dense<0.000000e+00> : vector<16x128xf32>
    %35 = tpu.matmul %32, %34, %cst_32 {dimension_numbers = #tpu.dot_dimension_numbers<[1], [0], [0], [1], [0, 0, 1, 1], [], []>} : vector<16x144xf32>, vector<144x128xf32>, vector<16x128xf32> -> vector<16x128xf32>
    %36 = arith.addf %31, %35 : vector<16x128xf32>
    %37 = vector.extract_strided_slice %27 {offsets = [2, 0], sizes = [16, 144], strides = [1, 1]} : vector<18x144xf32> to vector<16x144xf32>
    %c2_33 = arith.constant 2 : index
    %c0_34 = arith.constant 0 : index
    %c0_35 = arith.constant 0 : index
    %38 = vector.load %arg4[%c2_33, %c0_34, %c0_35] : memref<3x144x128xf32, #tpu.memory_space<vmem>>, vector<1x144x128xf32>
    %39 = vector.shape_cast %38 : vector<1x144x128xf32> to vector<144x128xf32>
    %cst_36 = arith.constant dense<0.000000e+00> : vector<16x128xf32>
    %40 = tpu.matmul %37, %39, %cst_36 {dimension_numbers = #tpu.dot_dimension_numbers<[1], [0], [0], [1], [0, 0, 1, 1], [], []>} : vector<16x144xf32>, vector<144x128xf32>, vector<16x128xf32> -> vector<16x128xf32>
    %41 = arith.addf %36, %40 : vector<16x128xf32>
    %42 = arith.addf %41, %26 : vector<16x128xf32>
    %c0_37 = arith.constant 0 : index
    %c0_38 = arith.constant 0 : index
    %43 = vector.load %arg6[%c0_37, %c0_38] : memref<1x128xf32, #tpu.memory_space<vmem>>, vector<1x128xf32>
    %44 = vector.broadcast %43 : vector<1x128xf32> to vector<16x128xf32>
    %45 = arith.addf %42, %44 : vector<16x128xf32>
    %cst_39 = arith.constant 0.000000e+00 : f32
    %46 = vector.broadcast %cst_39 : f32 to vector<16x128xf32>
    %47 = arith.maximumf %45, %46 : vector<16x128xf32>
    %c0_40 = arith.constant 0 : index
    %c0_41 = arith.constant 0 : index
    %c0_42 = arith.constant 0 : index
    %48 = vector.load %arg7[%c0_40, %c0_41, %c0_42] : memref<1x16x128xf32, #tpu.memory_space<vmem>>, vector<1x16x128xf32>
    %49 = vector.shape_cast %48 : vector<1x16x128xf32> to vector<16x128xf32>
    %50 = vector.shape_cast %47 : vector<16x128xf32> to vector<1x16x128xf32>
    tpu.vector_store %arg7[%c0_40, %c0_41, %c0_42], %50 {strides = array<i32>} : memref<1x16x128xf32, #tpu.memory_space<vmem>>, vector<1x16x128xf32>,
    return
  }
  func.func @transform_0(%arg0: i32) -> (i32, i32, i32) {
    %c0_i32 = arith.constant 0 : i32
    %c0_i32_0 = arith.constant 0 : i32
    %c0_i32_1 = arith.constant 0 : i32
    return %arg0, %c0_i32, %c0_i32_0 : i32, i32, i32
  }
  func.func @transform_1(%arg0: i32) -> (i32, i32, i32) {
    %c0_i32 = arith.constant 0 : i32
    %c0_i32_0 = arith.constant 0 : i32
    %c0_i32_1 = arith.constant 0 : i32
    %c0_i32_2 = arith.constant 0 : i32
    return %c0_i32, %c0_i32_0, %c0_i32_1 : i32, i32, i32
  }
  func.func @transform_2(%arg0: i32) -> (i32, i32) {
    %c0_i32 = arith.constant 0 : i32
    %c0_i32_0 = arith.constant 0 : i32
    %c0_i32_1 = arith.constant 0 : i32
    return %c0_i32, %c0_i32_0 : i32, i32
  }
  func.func @transform_3(%arg0: i32) -> (i32, i32, i32) {
    %c0_i32 = arith.constant 0 : i32
    %c0_i32_0 = arith.constant 0 : i32
    %c0_i32_1 = arith.constant 0 : i32
    %c0_i32_2 = arith.constant 0 : i32
    return %c0_i32, %c0_i32_0, %c0_i32_1 : i32, i32, i32
  }
  func.func @transform_4(%arg0: i32) -> (i32, i32) {
    %c0_i32 = arith.constant 0 : i32
    %c0_i32_0 = arith.constant 0 : i32
    %c0_i32_1 = arith.constant 0 : i32
    return %c0_i32, %c0_i32_0 : i32, i32
  }
  func.func @transform_5(%arg0: i32) -> (i32, i32) {
    %c0_i32 = arith.constant 0 : i32
    %c0_i32_0 = arith.constant 0 : i32
    %c0_i32_1 = arith.constant 0 : i32
    return %c0_i32, %c0_i32_0 : i32, i32
  }
  func.func @transform_6(%arg0: i32) -> (i32, i32, i32) {
    %c0_i32 = arith.constant 0 : i32
    %c0_i32_0 = arith.constant 0 : i32
    %c0_i32_1 = arith.constant 0 : i32
    return %arg0, %c0_i32, %c0_i32_0 : i32, i32, i32
  }
}

</mosaic_0001>

<llo_original>
// kernel: tile.33
$region0: #{tile.33}
  #allocation0 [shape = 's32[1]{0}', space=sflag, size = 0x4, scoped, tag = 'scoped memory for tile.33']
  %s0 = inlined_call_operand.vmem [shape: f32[8], index: 0, kind: input, shape index: {}]
  %s1 = inlined_call_operand.vmem [shape: f32[16,8], index: 1, kind: output, shape index: {}]
  // Predicated region
  $region2: #{tile.33} parent=0 // pred_check
    _
  $region3: #{tile.33} parent=0 // pred_check_branch
    %3 = sbr.rel (0) target = $region5
  $region4: #{tile.33} parent=0 // pred_region
    _
  $region5: #{tile.33} parent=0 // pred_fallthru
    _
  %v4 = vld [vmem:[%s0] ss:$0 sm:$0xff]
  %5 = vst [vmem:[%s1] sm:$0xff] %v4
  %s6 = scalar_lea.vmem %s1, 8
  %7 = vst [vmem:[%s6] sm:$0xff] %v4

// kernel: mul.283
$region0: #{mul.283}
  %s0 = inlined_call_operand.vmem [shape: f32[16,8], index: 0, kind: input, shape index: {}]
  %s1 = inlined_call_operand.vmem [shape: f32[128], index: 1, kind: output, shape index: {}]
  $region1: #{mul.283} parent=0
    #allocation0 [shape = 'u8[4096]{0}', space=vmem, size = 0x1000, scoped, tag = 'scoped mem for output reshape']
    %v2 = vld [vmem:[%s0] sm:$0x1]
    %vm3 = vcmask 64512
    %4 = vst.msk [vmem:[#allocation0] sm:$0x1] %vm3, %v2
    %s5 = scalar_lea.vmem %s0, 15
    %v6 = vld [vmem:[%s5] sm:$0x1]
    %7 = vrot.lane.b32.xlu0 %v6, 120
    %v8 = vpop.permute.xlu0 %7
    %vm9 = vcmask 1048512
    %10 = vst.msk [vmem:[#allocation0] sm:$0x1] %vm9, %v8
    %s11 = scalar_lea.vmem %s0, 14
    %v12 = vld [vmem:[%s11] sm:$0x1]
    %13 = vrot.lane.b32.xlu0 %v12, 112
    %v14 = vpop.permute.xlu0 %13
    %vm15 = vcmask 982912
    %16 = vst.msk [vmem:[#allocation0] sm:$0x1] %vm15, %v14
    %s17 = scalar_lea.vmem %s0, 13
    %v18 = vld [vmem:[%s17] sm:$0x1]
    %19 = vrot.lane.b32.xlu0 %v18, 104
    %v20 = vpop.permute.xlu0 %19
    %vm21 = vcmask 917312
    %22 = vst.msk [vmem:[#allocation0] sm:$0x1] %vm21, %v20
    %s23 = scalar_lea.vmem %s0, 12
    %v24 = vld [vmem:[%s23] sm:$0x1]
    %25 = vrot.lane.b32.xlu0 %v24, 96
    %v26 = vpop.permute.xlu0 %25
    %vm27 = vcmask 851712
    %28 = vst.msk [vmem:[#allocation0] sm:$0x1] %vm27, %v26
    %s29 = scalar_lea.vmem %s0, 11
    %v30 = vld [vmem:[%s29] sm:$0x1]
    %31 = vrot.lane.b32.xlu0 %v30, 88
    %v32 = vpop.permute.xlu0 %31
    %vm33 = vcmask 786112
    %34 = vst.msk [vmem:[#allocation0] sm:$0x1] %vm33, %v32
    %s35 = scalar_lea.vmem %s0, 10
    %v36 = vld [vmem:[%s35] sm:$0x1]
    %37 = vrot.lane.b32.xlu0 %v36, 80
    %v38 = vpop.permute.xlu0 %37
    %vm39 = vcmask 720512
    %40 = vst.msk [vmem:[#allocation0] sm:$0x1] %vm39, %v38
    %s41 = scalar_lea.vmem %s0, 9
    %v42 = vld [vmem:[%s41] sm:$0x1]
    %43 = vrot.lane.b32.xlu0 %v42, 72
    %v44 = vpop.permute.xlu0 %43
    %vm45 = vcmask 654912
    %46 = vst.msk [vmem:[#allocation0] sm:$0x1] %vm45, %v44
    %s47 = scalar_lea.vmem %s0, 8
    %v48 = vld [vmem:[%s47] sm:$0x1]
    %49 = vrot.lane.b32.xlu0 %v48, 64
    %v50 = vpop.permute.xlu0 %49
    %vm51 = vcmask 589312
    %52 = vst.msk [vmem:[#allocation0] sm:$0x1] %vm51, %v50
    %s53 = scalar_lea.vmem %s0, 7
    %v54 = vld [vmem:[%s53] sm:$0x1]
    %55 = vrot.lane.b32.xlu0 %v54, 56
    %v56 = vpop.permute.xlu0 %55
    %vm57 = vcmask 523712
    %58 = vst.msk [vmem:[#allocation0] sm:$0x1] %vm57, %v56
    %s59 = scalar_lea.vmem %s0, 6
    %v60 = vld [vmem:[%s59] sm:$0x1]
    %61 = vrot.lane.b32.xlu0 %v60, 48
    %v62 = vpop.permute.xlu0 %61
    %vm63 = vcmask 458112
    %64 = vst.msk [vmem:[#allocation0] sm:$0x1] %vm63, %v62
    %s65 = scalar_lea.vmem %s0, 5
    %v66 = vld [vmem:[%s65] sm:$0x1]
    %67 = vrot.lane.b32.xlu0 %v66, 40
    %v68 = vpop.permute.xlu0 %67
    %vm69 = vcmask 392512
    %70 = vst.msk [vmem:[#allocation0] sm:$0x1] %vm69, %v68
    %s71 = scalar_lea.vmem %s0, 4
    %v72 = vld [vmem:[%s71] sm:$0x1]
    %73 = vrot.lane.b32.xlu0 %v72, 32
    %v74 = vpop.permute.xlu0 %73
    %vm75 = vcmask 326912
    %76 = vst.msk [vmem:[#allocation0] sm:$0x1] %vm75, %v74
    %s77 = scalar_lea.vmem %s0, 3
    %v78 = vld [vmem:[%s77] sm:$0x1]
    %79 = vrot.lane.b32.xlu0 %v78, 24
    %v80 = vpop.permute.xlu0 %79
    %vm81 = vcmask 261312
    %82 = vst.msk [vmem:[#allocation0] sm:$0x1] %vm81, %v80
    %s83 = scalar_lea.vmem %s0, 2
    %v84 = vld [vmem:[%s83] sm:$0x1]
    %85 = vrot.lane.b32.xlu0 %v84, 16
    %v86 = vpop.permute.xlu0 %85
    %vm87 = vcmask 195712
    %88 = vst.msk [vmem:[#allocation0] sm:$0x1] %vm87, %v86
    %s89 = scalar_lea.vmem %s0, 1
    %v90 = vld [vmem:[%s89] sm:$0x1]
    %91 = vrot.lane.b32.xlu0 %v90, 8
    %v92 = vpop.permute.xlu0 %91
    %vm93 = vcmask 130112
    %94 = vst.msk [vmem:[#allocation0] sm:$0x1] %vm93, %v92
    %s96 = sshllo.u32 0, 1
    %v98 = vld [vmem:[#allocation0] sm:%s96]
    %s99 = sshllo.u32 0, 1
    %100 = vst [vmem:[%s1] sm:%s99] %v98

// kernel: tile.49
$region0: #{tile.49}
  %s0 = inlined_call_operand.vmem [shape: f32[16,8], index: 0, kind: input, shape index: {}]
  %s1 = inlined_call_operand.vmem [shape: f32[1,128], index: 1, kind: output, shape index: {}]
  $region1: #{tile.49} parent=0
    #allocation0 [shape = 'u8[4096]{0}', space=vmem, size = 0x1000, scoped, tag = 'scoped mem for output reshape']
    %v2 = vld [vmem:[%s0] sm:$0x1]
    %vm3 = vcmask 64512
    %4 = vst.msk [vmem:[#allocation0] sm:$0x1] %vm3, %v2
    %s5 = scalar_lea.vmem %s0, 15
    %v6 = vld [vmem:[%s5] sm:$0x1]
    %7 = vrot.lane.b32.xlu0 %v6, 120
    %v8 = vpop.permute.xlu0 %7
    %vm9 = vcmask 1048512
    %10 = vst.msk [vmem:[#allocation0] sm:$0x1] %vm9, %v8
    %s11 = scalar_lea.vmem %s0, 14
    %v12 = vld [vmem:[%s11] sm:$0x1]
    %13 = vrot.lane.b32.xlu0 %v12, 112
    %v14 = vpop.permute.xlu0 %13
    %vm15 = vcmask 982912
    %16 = vst.msk [vmem:[#allocation0] sm:$0x1] %vm15, %v14
    %s17 = scalar_lea.vmem %s0, 13
    %v18 = vld [vmem:[%s17] sm:$0x1]
    %19 = vrot.lane.b32.xlu0 %v18, 104
    %v20 = vpop.permute.xlu0 %19
    %vm21 = vcmask 917312
    %22 = vst.msk [vmem:[#allocation0] sm:$0x1] %vm21, %v20
    %s23 = scalar_lea.vmem %s0, 12
    %v24 = vld [vmem:[%s23] sm:$0x1]
    %25 = vrot.lane.b32.xlu0 %v24, 96
    %v26 = vpop.permute.xlu0 %25
    %vm27 = vcmask 851712
    %28 = vst.msk [vmem:[#allocation0] sm:$0x1] %vm27, %v26
    %s29 = scalar_lea.vmem %s0, 11
    %v30 = vld [vmem:[%s29] sm:$0x1]
    %31 = vrot.lane.b32.xlu0 %v30, 88
    %v32 = vpop.permute.xlu0 %31
    %vm33 = vcmask 786112
    %34 = vst.msk [vmem:[#allocation0] sm:$0x1] %vm33, %v32
    %s35 = scalar_lea.vmem %s0, 10
    %v36 = vld [vmem:[%s35] sm:$0x1]
    %37 = vrot.lane.b32.xlu0 %v36, 80
    %v38 = vpop.permute.xlu0 %37
    %vm39 = vcmask 720512
    %40 = vst.msk [vmem:[#allocation0] sm:$0x1] %vm39, %v38
    %s41 = scalar_lea.vmem %s0, 9
    %v42 = vld [vmem:[%s41] sm:$0x1]
    %43 = vrot.lane.b32.xlu0 %v42, 72
    %v44 = vpop.permute.xlu0 %43
    %vm45 = vcmask 654912
    %46 = vst.msk [vmem:[#allocation0] sm:$0x1] %vm45, %v44
    %s47 = scalar_lea.vmem %s0, 8
    %v48 = vld [vmem:[%s47] sm:$0x1]
    %49 = vrot.lane.b32.xlu0 %v48, 64
    %v50 = vpop.permute.xlu0 %49
    %vm51 = vcmask 589312
    %52 = vst.msk [vmem:[#allocation0] sm:$0x1] %vm51, %v50
    %s53 = scalar_lea.vmem %s0, 7
    %v54 = vld [vmem:[%s53] sm:$0x1]
    %55 = vrot.lane.b32.xlu0 %v54, 56
    %v56 = vpop.permute.xlu0 %55
    %vm57 = vcmask 523712
    %58 = vst.msk [vmem:[#allocation0] sm:$0x1] %vm57, %v56
    %s59 = scalar_lea.vmem %s0, 6
    %v60 = vld [vmem:[%s59] sm:$0x1]
    %61 = vrot.lane.b32.xlu0 %v60, 48
    %v62 = vpop.permute.xlu0 %61
    %vm63 = vcmask 458112
    %64 = vst.msk [vmem:[#allocation0] sm:$0x1] %vm63, %v62
    %s65 = scalar_lea.vmem %s0, 5
    %v66 = vld [vmem:[%s65] sm:$0x1]
    %67 = vrot.lane.b32.xlu0 %v66, 40
    %v68 = vpop.permute.xlu0 %67
    %vm69 = vcmask 392512
    %70 = vst.msk [vmem:[#allocation0] sm:$0x1] %vm69, %v68
    %s71 = scalar_lea.vmem %s0, 4
    %v72 = vld [vmem:[%s71] sm:$0x1]
    %73 = vrot.lane.b32.xlu0 %v72, 32
    %v74 = vpop.permute.xlu0 %73
    %vm75 = vcmask 326912
    %76 = vst.msk [vmem:[#allocation0] sm:$0x1] %vm75, %v74
    %s77 = scalar_lea.vmem %s0, 3
    %v78 = vld [vmem:[%s77] sm:$0x1]
    %79 = vrot.lane.b32.xlu0 %v78, 24
    %v80 = vpop.permute.xlu0 %79
    %vm81 = vcmask 261312
    %82 = vst.msk [vmem:[#allocation0] sm:$0x1] %vm81, %v80
    %s83 = scalar_lea.vmem %s0, 2
    %v84 = vld [vmem:[%s83] sm:$0x1]
    %85 = vrot.lane.b32.xlu0 %v84, 16
    %v86 = vpop.permute.xlu0 %85
    %vm87 = vcmask 195712
    %88 = vst.msk [vmem:[#allocation0] sm:$0x1] %vm87, %v86
    %s89 = scalar_lea.vmem %s0, 1
    %v90 = vld [vmem:[%s89] sm:$0x1]
    %91 = vrot.lane.b32.xlu0 %v90, 8
    %v92 = vpop.permute.xlu0 %91
    %vm93 = vcmask 130112
    %94 = vst.msk [vmem:[#allocation0] sm:$0x1] %vm93, %v92
    %s96 = sshllo.u32 0, 1
    %v98 = vld [vmem:[#allocation0] sm:%s96]
    %s99 = sshllo.u32 0, 1
    %100 = vst [vmem:[%s1] sm:%s99] %v98

// kernel: basic_block_rense_ensemble.1
$region0: #{basic_block_rense_ensemble.1}
  #allocation0 [shape = 'u32[]', space=smem, size = 0x4, offset = 0x4, fixed_abs, tag = 'smem constant byte address 0x4 - core index']
  #allocation1 [shape = 'u32[144,128]{1,0:T(1,128)}', space=vmem, size = 0x12000, scoped, tag = 'internal scratch']
  #allocation2 [shape = 'f32[18,144]{1,0:T(8,128)}', space=vmem, size = 0x6000, scoped, tag = 'scratch operand']
  %s0 = inlined_call_operand.vmem [shape: f32[2,18,72], index: 0, kind: input, shape index: {}]
  %s1 = inlined_call_operand.vmem [shape: f32[3,72,144], index: 1, kind: input, shape index: {}]
  %s2 = inlined_call_operand.vmem [shape: f32[1,144], index: 2, kind: input, shape index: {}]
  %s3 = inlined_call_operand.vmem [shape: f32[3,144,128], index: 3, kind: input, shape index: {}]
  %s4 = inlined_call_operand.vmem [shape: f32[72,128], index: 4, kind: input, shape index: {}]
  %s5 = inlined_call_operand.vmem [shape: f32[1,128], index: 5, kind: input, shape index: {}]
  %s6 = inlined_call_operand.vmem [shape: f32[2,16,128], index: 6, kind: output, shape index: {}]
  %s7 = sld [smem:[#allocation0]]
  $region57: #{basic_block_rense_ensemble.1} parent=0
    _
  %s9 = ssub.s32 1, %s7
  %s10 = scalar_select 0, %s9, %s7
  loop: start=0, step=1, limit=4
  $region2: #{basic_block_rense_ensemble.1} parent=0 // loop_pre_header
    _
  $region3: #{basic_block_rense_ensemble.1} parent=0 // loop_header
    %s12 = sphi 0, %s16
    %p13 = scmp.ge.s32.totalorder %s12, 4
    %s22 = sphi 0, %s24
    %s25 = sphi 0, %s22
    %s26 = sphi 0, %s25
    %s42 = sphi 0, %s26
    %s46 = sphi 0, %s46
    %s48 = sphi 0, %s46
    %s49 = sphi 0, %s48
    %s63 = sphi 0, %s49
    %s67 = sphi 0, %s67
    %s69 = sphi 0, %s67
    %s70 = sphi 0, %s69
    %s84 = sphi 0, %s70
    %s88 = sphi 0, %s88
    %s90 = sphi 0, %s88
    %s91 = sphi 0, %s90
    %s105 = sphi 0, %s91
    %s109 = sphi 0, %s109
    %s111 = sphi 0, %s109
    %s112 = sphi 0, %s111
    %s126 = sphi 0, %s112
    %s130 = sphi 0, %s130
    %s132 = sphi 0, %s130
    %s133 = sphi 0, %s132
    %s147 = sphi 0, %s133
    %s153 = sphi 0, %s155
    %s156 = sphi 0, %s153
    %s157 = sphi 0, %s156
    %s173 = sphi 0, %s157
  $region4: #{basic_block_rense_ensemble.1} parent=0 // loop_header_branch
    %15 = sbr.rel (%p13) target = $region8
  $region5: #{basic_block_rense_ensemble.1} parent=0 // loop_body
    %s17 = ssub.s32 %s12, 1
    %s18 = ssub.s32 %s12, 2
    %s19 = sadd.s32 %s12, 1
    %s20 = ssub.s32 %s12, %s19
    %p21 = scmp.eq.s32.totalorder %s20, 0
    %s23 = sadd.s32 %s22, 1
    %s24 = scalar_select %p21, %s22, %s23
    %p27 = pneg %p21
    %p28 = scmp.eq.s32.totalorder %s12, 1
    %p29 = por %p27, %p28
    %p30 = scmp.ne.s32.totalorder %s22, %s25
    %p31 = scmp.eq.s32.totalorder %s12, 0
    %p32 = por %p30, %p31
    %p33 = scmp.ne.s32.totalorder %s22, %s25
    %p34 = scmp.eq.s32.totalorder %s17, 1
    %p35 = por %p33, %p34
    %p36 = scmp.ne.s32.totalorder %s25, %s26
    %p37 = scmp.eq.s32.totalorder %s17, 0
    %p38 = por %p36, %p37
    %p39 = scmp.ne.s32.totalorder %s25, %s26
    %p40 = scmp.eq.s32.totalorder %s18, 1
    %p41 = por %p39, %p40
    %p43 = scmp.ne.s32.totalorder %s26, %s42
    %p44 = scmp.eq.s32.totalorder %s18, 0
    %p45 = por %p43, %p44
    %s47 = sadd.s32 %s46, 1
    %p50 = scmp.eq.s32.totalorder %s12, 1
    %p51 = scmp.ne.s32.totalorder %s46, %s48
    %p52 = scmp.eq.s32.totalorder %s12, 0
    %p53 = por %p51, %p52
    %p54 = scmp.ne.s32.totalorder %s46, %s48
    %p55 = scmp.eq.s32.totalorder %s17, 1
    %p56 = por %p54, %p55
    %p57 = scmp.ne.s32.totalorder %s48, %s49
    %p58 = scmp.eq.s32.totalorder %s17, 0
    %p59 = por %p57, %p58
    %p60 = scmp.ne.s32.totalorder %s48, %s49
    %p61 = scmp.eq.s32.totalorder %s18, 1
    %p62 = por %p60, %p61
    %p64 = scmp.ne.s32.totalorder %s49, %s63
    %p65 = scmp.eq.s32.totalorder %s18, 0
    %p66 = por %p64, %p65
    %s68 = sadd.s32 %s67, 1
    %p71 = scmp.eq.s32.totalorder %s12, 1
    %p72 = scmp.ne.s32.totalorder %s67, %s69
    %p73 = scmp.eq.s32.totalorder %s12, 0
    %p74 = por %p72, %p73
    %p75 = scmp.ne.s32.totalorder %s67, %s69
    %p76 = scmp.eq.s32.totalorder %s17, 1
    %p77 = por %p75, %p76
    %p78 = scmp.ne.s32.totalorder %s69, %s70
    %p79 = scmp.eq.s32.totalorder %s17, 0
    %p80 = por %p78, %p79
    %p81 = scmp.ne.s32.totalorder %s69, %s70
    %p82 = scmp.eq.s32.totalorder %s18, 1
    %p83 = por %p81, %p82
    %p85 = scmp.ne.s32.totalorder %s70, %s84
    %p86 = scmp.eq.s32.totalorder %s18, 0
    %p87 = por %p85, %p86
    %s89 = sadd.s32 %s88, 1
    %p92 = scmp.eq.s32.totalorder %s12, 1
    %p93 = scmp.ne.s32.totalorder %s88, %s90
    %p94 = scmp.eq.s32.totalorder %s12, 0
    %p95 = por %p93, %p94
    %p96 = scmp.ne.s32.totalorder %s88, %s90
    %p97 = scmp.eq.s32.totalorder %s17, 1
    %p98 = por %p96, %p97
    %p99 = scmp.ne.s32.totalorder %s90, %s91
    %p100 = scmp.eq.s32.totalorder %s17, 0
    %p101 = por %p99, %p100
    %p102 = scmp.ne.s32.totalorder %s90, %s91
    %p103 = scmp.eq.s32.totalorder %s18, 1
    %p104 = por %p102, %p103
    %p106 = scmp.ne.s32.totalorder %s91, %s105
    %p107 = scmp.eq.s32.totalorder %s18, 0
    %p108 = por %p106, %p107
    %s110 = sadd.s32 %s109, 1
    %p113 = scmp.eq.s32.totalorder %s12, 1
    %p114 = scmp.ne.s32.totalorder %s109, %s111
    %p115 = scmp.eq.s32.totalorder %s12, 0
    %p116 = por %p114, %p115
    %p117 = scmp.ne.s32.totalorder %s109, %s111
    %p118 = scmp.eq.s32.totalorder %s17, 1
    %p119 = por %p117, %p118
    %p120 = scmp.ne.s32.totalorder %s111, %s112
    %p121 = scmp.eq.s32.totalorder %s17, 0
    %p122 = por %p120, %p121
    %p123 = scmp.ne.s32.totalorder %s111, %s112
    %p124 = scmp.eq.s32.totalorder %s18, 1
    %p125 = por %p123, %p124
    %p127 = scmp.ne.s32.totalorder %s112, %s126
    %p128 = scmp.eq.s32.totalorder %s18, 0
    %p129 = por %p127, %p128
    %s131 = sadd.s32 %s130, 1
    %p134 = scmp.eq.s32.totalorder %s12, 1
    %p135 = scmp.ne.s32.totalorder %s130, %s132
    %p136 = scmp.eq.s32.totalorder %s12, 0
    %p137 = por %p135, %p136
    %p138 = scmp.ne.s32.totalorder %s130, %s132
    %p139 = scmp.eq.s32.totalorder %s17, 1
    %p140 = por %p138, %p139
    %p141 = scmp.ne.s32.totalorder %s132, %s133
    %p142 = scmp.eq.s32.totalorder %s17, 0
    %p143 = por %p141, %p142
    %p144 = scmp.ne.s32.totalorder %s132, %s133
    %p145 = scmp.eq.s32.totalorder %s18, 1
    %p146 = por %p144, %p145
    %p148 = scmp.ne.s32.totalorder %s133, %s147
    %p149 = scmp.eq.s32.totalorder %s18, 0
    %p150 = por %p148, %p149
    %s151 = ssub.s32 %s12, %s19
    %p152 = scmp.eq.s32.totalorder %s151, 0
    %s154 = sadd.s32 %s153, 1
    %s155 = scalar_select %p152, %s153, %s154
    %p158 = pneg %p152
    %p159 = scmp.eq.s32.totalorder %s12, 1
    %p160 = por %p158, %p159
    %p161 = scmp.ne.s32.totalorder %s153, %s156
    %p162 = scmp.eq.s32.totalorder %s12, 0
    %p163 = por %p161, %p162
    %p164 = scmp.ne.s32.totalorder %s153, %s156
    %p165 = scmp.eq.s32.totalorder %s17, 1
    %p166 = por %p164, %p165
    %p167 = scmp.ne.s32.totalorder %s156, %s157
    %p168 = scmp.eq.s32.totalorder %s17, 0
    %p169 = por %p167, %p168
    %p170 = scmp.ne.s32.totalorder %s156, %s157
    %p171 = scmp.eq.s32.totalorder %s18, 1
    %p172 = por %p170, %p171
    %p174 = scmp.ne.s32.totalorder %s157, %s173
    %p175 = scmp.eq.s32.totalorder %s18, 0
    %p176 = por %p174, %p175
    %p177 = scmp.le.s32.totalorder 1, %s12
    %p178 = scmp.lt.s32.totalorder %s12, 3
    %p179 = pnand %p177, %p178
    %p180 = pneg %p179
    // Predicated region
    $region9: #{basic_block_rense_ensemble.1} parent=5 // pred_check
      _
    $region10: #{basic_block_rense_ensemble.1} parent=5 // pred_check_branch
      %182 = sbr.rel (%p179) target = $region12
    $region11: #{basic_block_rense_ensemble.1} parent=5 // pred_region
      %s183 = ssub.s32 %s12, 1
      // Predicated region
      $region13: #{basic_block_rense_ensemble.1} parent=11 // pred_check
        %p184 = pneg %p59
      $region14: #{basic_block_rense_ensemble.1} parent=11 // pred_check_branch
        %186 = sbr.rel (%p184) target = $region16
      $region15: #{basic_block_rense_ensemble.1} parent=11 // pred_region
        _
      $region16: #{basic_block_rense_ensemble.1} parent=11 // pred_fallthru
        _
      // Predicated region
      $region17: #{basic_block_rense_ensemble.1} parent=11 // pred_check
        %p187 = pneg %p80
      $region18: #{basic_block_rense_ensemble.1} parent=11 // pred_check_branch
        %189 = sbr.rel (%p187) target = $region20
      $region19: #{basic_block_rense_ensemble.1} parent=11 // pred_region
        _
      $region20: #{basic_block_rense_ensemble.1} parent=11 // pred_fallthru
        _
      // Predicated region
      $region21: #{basic_block_rense_ensemble.1} parent=11 // pred_check
        %p190 = pneg %p101
      $region22: #{basic_block_rense_ensemble.1} parent=11 // pred_check_branch
        %192 = sbr.rel (%p190) target = $region24
      $region23: #{basic_block_rense_ensemble.1} parent=11 // pred_region
        _
      $region24: #{basic_block_rense_ensemble.1} parent=11 // pred_fallthru
        _
      // Predicated region
      $region25: #{basic_block_rense_ensemble.1} parent=11 // pred_check
        %p193 = pneg %p122
      $region26: #{basic_block_rense_ensemble.1} parent=11 // pred_check_branch
        %195 = sbr.rel (%p193) target = $region28
      $region27: #{basic_block_rense_ensemble.1} parent=11 // pred_region
        _
      $region28: #{basic_block_rense_ensemble.1} parent=11 // pred_fallthru
        _
      // Predicated region
      $region29: #{basic_block_rense_ensemble.1} parent=11 // pred_check
        %p196 = pneg %p143
      $region30: #{basic_block_rense_ensemble.1} parent=11 // pred_check_branch
        %198 = sbr.rel (%p196) target = $region32
      $region31: #{basic_block_rense_ensemble.1} parent=11 // pred_region
        _
      $region32: #{basic_block_rense_ensemble.1} parent=11 // pred_fallthru
        _
    $region12: #{basic_block_rense_ensemble.1} parent=5 // pred_fallthru
      _
    %p199 = scmp.lt.s32.totalorder %s12, 2
    // Predicated region
    $region33: #{basic_block_rense_ensemble.1} parent=5 // pred_check
      %p200 = pneg %p199
    $region34: #{basic_block_rense_ensemble.1} parent=5 // pred_check_branch
      %202 = sbr.rel (%p200) target = $region36
    $region35: #{basic_block_rense_ensemble.1} parent=5 // pred_region
      // Predicated region
      $region37: #{basic_block_rense_ensemble.1} parent=35 // pred_check
        %p203 = pneg %p32
      $region38: #{basic_block_rense_ensemble.1} parent=35 // pred_check_branch
        %205 = sbr.rel (%p203) target = $region40
      $region39: #{basic_block_rense_ensemble.1} parent=35 // pred_region
        %p206 = scmp.lt.s32.totalorder %s12, 1
        %s207 = scalar_select %p206, %s12, 1
        %s208 = smul.addr %s207, 3
        %s209 = smul.addr %s208, 8
        %s210 = scalar_lea.vmem %s0, %s209
      $region40: #{basic_block_rense_ensemble.1} parent=35 // pred_fallthru
        _
    $region36: #{basic_block_rense_ensemble.1} parent=5 // pred_fallthru
      _
    %p211 = scmp.le.s32.totalorder 1, %s12
    %p212 = scmp.lt.s32.totalorder %s12, 3
    %p213 = pnand %p211, %p212
    %p214 = pneg %p213
    // Predicated region
    $region41: #{basic_block_rense_ensemble.1} parent=5 // pred_check
      _
    $region42: #{basic_block_rense_ensemble.1} parent=5 // pred_check_branch
      %216 = sbr.rel (%p213) target = $region44
    $region43: #{basic_block_rense_ensemble.1} parent=5 // pred_region
      %s217 = ssub.s32 %s12, 1
      %p218 = scmp.lt.s32.totalorder %s17, 1
      %s219 = scalar_select %p218, %s17, 1
      %s220 = smul.addr %s219, 3
      %s221 = smul.addr %s220, 8
      %s222 = scalar_lea.vmem %s0, %s221
      %p223 = pneg %p38
      %p224 = pneg %p35
      %p225 = pneg %p59
      %p226 = pneg %p56
      %p227 = pneg %p80
      %p228 = pneg %p77
      %p229 = pneg %p101
      %p230 = pneg %p98
      %p231 = pneg %p122
      %p232 = pneg %p119
      %p233 = pneg %p143
      %p234 = pneg %p140
      %p235 = pneg %p169
      %p236 = pneg %p166
      %p237 = scmp.lt.s32.totalorder %s17, 1
      %s238 = scalar_select %p237, %s17, 1
      %s239 = smul.addr %s238, 2
      %s240 = smul.addr %s239, 8
      %s241 = scalar_lea.vmem %s6, %s240
      %p242 = scmp.lt.s32.totalorder %s17, 1
      %s243 = scalar_select %p242, %s17, 1
      %s244 = smul.addr %s243, 3
      %s245 = smul.addr %s244, 8
      %s246 = scalar_lea.vmem %s0, %s245
      %p247 = scmp.lt.s32.totalorder %s17, 1
      %s248 = scalar_select %p247, %s17, 1
      %s249 = smul.addr %s248, 2
      %s250 = smul.addr %s249, 8
      %s251 = scalar_lea.vmem %s6, %s250
      %v252 = vld [vmem:[%s246] sm:$0xff]
      %v253 = vld [vmem:[%s246 + $0x8] sm:$0xff]
      %v254 = vld [vmem:[%s246 + $0x10] sm:$0x3]
      %v255 = vld [vmem:[%s1] sm:$0xff]
      %v256 = vld [vmem:[%s1 + $0x8] sm:$0xff]
      %v257 = vld [vmem:[%s1 + $0x10] sm:$0xff]
      %v258 = vld [vmem:[%s1 + $0x18] sm:$0xff]
      %v259 = vld [vmem:[%s1 + $0x20] sm:$0xff]
      %v260 = vld [vmem:[%s1 + $0x28] sm:$0xff]
      %v261 = vld [vmem:[%s1 + $0x30] sm:$0xff]
      %v262 = vld [vmem:[%s1 + $0x38] sm:$0xff]
      %v263 = vld [vmem:[%s1 + $0x40] sm:$0xff]
      %v264 = vld [vmem:[%s1 + $0x48] sm:$0xff]
      %v265 = vld [vmem:[%s1 + $0x50] sm:$0xff]
      %v266 = vld [vmem:[%s1 + $0x58] sm:$0xff]
      %v267 = vld [vmem:[%s1 + $0x60] sm:$0xff]
      %v268 = vld [vmem:[%s1 + $0x68] sm:$0xff]
      %v269 = vld [vmem:[%s1 + $0x70] sm:$0xff]
      %v270 = vld [vmem:[%s1 + $0x78] sm:$0xff]
      %v271 = vld [vmem:[%s1 + $0x80] sm:$0xff]
      %v272 = vld [vmem:[%s1 + $0x88] sm:$0xff]
      %s273 = scalar_lea.vmem %s1, 144
      %v274 = vld [vmem:[%s273] sm:$0xff]
      %v275 = vld [vmem:[%s273 + $0x8] sm:$0xff]
      %v276 = vld [vmem:[%s273 + $0x10] sm:$0xff]
      %v277 = vld [vmem:[%s273 + $0x18] sm:$0xff]
      %v278 = vld [vmem:[%s273 + $0x20] sm:$0xff]
      %v279 = vld [vmem:[%s273 + $0x28] sm:$0xff]
      %v280 = vld [vmem:[%s273 + $0x30] sm:$0xff]
      %v281 = vld [vmem:[%s273 + $0x38] sm:$0xff]
      %v282 = vld [vmem:[%s273 + $0x40] sm:$0xff]
      %v283 = vld [vmem:[%s273 + $0x48] sm:$0xff]
      %v284 = vld [vmem:[%s273 + $0x50] sm:$0xff]
      %v285 = vld [vmem:[%s273 + $0x58] sm:$0xff]
      %v286 = vld [vmem:[%s273 + $0x60] sm:$0xff]
      %v287 = vld [vmem:[%s273 + $0x68] sm:$0xff]
      %v288 = vld [vmem:[%s273 + $0x70] sm:$0xff]
      %v289 = vld [vmem:[%s273 + $0x78] sm:$0xff]
      %v290 = vld [vmem:[%s273 + $0x80] sm:$0xff]
      %v291 = vld [vmem:[%s273 + $0x88] sm:$0xff]
      %vm295 = vcmask 1046528
      %v296 = vrot.slane %v252, 1
      %v297 = vrot.slane %v253, 1
      %v298 = vsel %vm295, %v296, %v297
      %v299 = vrot.slane %v254, 1
      %v300 = vsel %vm295, %v297, %v299
      %vm301 = vcmask 588800
      %v302 = vsel %vm301, %v298, 0
      %v304 = vsel %vm301, %v300, 0
      %306 = vmatprep.subr.mxu0 %v275
      %307 = vmatpush1.msra.mxu0 %v274
      %308 = vmatprep.subr.mxu0 %v277
      %309 = vmatpush1.msra.mxu0 %v276
      %310 = vmatprep.subr.mxu0 %v279
      %311 = vmatpush1.msra.mxu0 %v278
      %312 = vmatprep.subr.mxu0 %v281
      %313 = vmatpush1.msra.mxu0 %v280
      %314 = vmatprep.subr.mxu0 %v283
      %315 = vmatpush1.msra.mxu0 %v282
      %316 = vmatprep.subr.mxu0 %v285
      %317 = vmatpush1.msra.mxu0 %v284
      %318 = vmatprep.subr.mxu0 %v287
      %319 = vmatpush1.msra.mxu0 %v286
      %320 = vmatprep.subr.mxu0 %v289
      %321 = vmatpush1.msra.mxu0 %v288
      %322 = vmatprep.subr.mxu0 %v291
      %323 = vmatpush1.msra.mxu0 %v290
      %324 = vmatprep.subr.mxu0 0.0
      %325 = vmatpush1.msra.mxu0 0.0
      %326 = vmatprep.subr.mxu0 0.0
      %327 = vmatpush1.msra.mxu0 0.0
      %328 = vmatprep.subr.mxu0 0.0
      %329 = vmatpush1.msra.mxu0 0.0
      %330 = vmatprep.subr.mxu0 0.0
      %331 = vmatpush1.msra.mxu0 0.0
      %332 = vmatprep.subr.mxu0 0.0
      %333 = vmatpush1.msra.mxu0 0.0
      %334 = vmatprep.subr.mxu0 0.0
      %335 = vmatpush1.msra.mxu0 0.0
      %336 = vmatprep.subr.mxu0 0.0
      %337 = vmatpush1.msra.mxu0 0.0
      %338 = vmatprep.subr.mxu0 0.0
      %339 = vmatpush1.msra.mxu0 0.0
      %340 = vmatprep.subr.mxu0 0.0
      %341 = vmatpush1.msra.mxu0 0.0
      %342 = vmatprep.subr.mxu0 0.0
      %343 = vmatpush1.msra.mxu0 0.0
      %344 = vmatprep.subr.mxu0 0.0
      %345 = vmatpush1.msra.mxu0 0.0
      %346 = vmatprep.subr.mxu0 0.0
      %347 = vmatpush1.msra.mxu0 0.0
      %348 = vmatprep.subr.mxu0 0.0
      %349 = vmatpush1.msra.mxu0 0.0
      %350 = vmatprep.subr.mxu0 0.0
      %351 = vmatpush1.msra.mxu0 0.0
      %352 = vmatprep.subr.mxu0 0.0
      %353 = vmatpush1.msra.mxu0 0.0
      %354 = vmatprep.subr.mxu0 0.0
      %355 = vmatpush1.msra.mxu0 0.0
      %356 = vmatprep.subr.mxu0 0.0
      %357 = vmatpush1.msra.mxu0 0.0
      %358 = vmatprep.subr.mxu0 0.0
      %359 = vmatpush1.msra.mxu0 0.0
      %360 = vmatprep.subr.mxu0 0.0
      %361 = vmatpush1.msra.mxu0 0.0
      %362 = vmatprep.subr.mxu0 0.0
      %363 = vmatpush1.msra.mxu0 0.0
      %364 = vmatprep.subr.mxu0 0.0
      %365 = vmatpush1.msra.mxu0 0.0
      %366 = vmatprep.subr.mxu0 0.0
      %367 = vmatpush1.msra.mxu0 0.0
      %368 = vmatprep.subr.mxu0 0.0
      %369 = vmatpush1.msra.mxu0 0.0
      %370 = vmatprep.mubr.f32.mxu0 0.0
      %371 = vmatmul.mubr.f32.gmra.mrb[0].mxu0 %v302
      %v372 = vpop.f32.mrb[0].mxu0
      %v373 = vadd.f32 0.0, %v372
      %v374 = vpop.f32.mrb[0].mxu0
      %v375 = vadd.f32 0.0, %v374
      %376 = vmatprep.mubr.f32.mxu0 0.0
      %377 = vmatmul.mubr.f32.gmra.mrb[0].mxu0 %v304
      %v378 = vpop.f32.mrb[0].mxu0
      %v379 = vadd.f32 0.0, %v378
      %v380 = vpop.f32.mrb[0].mxu0
      %v381 = vadd.f32 0.0, %v380
      %382 = vdwg.mxu0
      %v383 = vsel %vm301, %v252, 0
      %v385 = vsel %vm301, %v253, 0
      %387 = vmatprep.subr.mxu0 %v256
      %388 = vmatpush1.msra.mxu0 %v255
      %389 = vmatprep.subr.mxu0 %v258
      %390 = vmatpush1.msra.mxu0 %v257
      %391 = vmatprep.subr.mxu0 %v260
      %392 = vmatpush1.msra.mxu0 %v259
      %393 = vmatprep.subr.mxu0 %v262
      %394 = vmatpush1.msra.mxu0 %v261
      %395 = vmatprep.subr.mxu0 %v264
      %396 = vmatpush1.msra.mxu0 %v263
      %397 = vmatprep.subr.mxu0 %v266
      %398 = vmatpush1.msra.mxu0 %v265
      %399 = vmatprep.subr.mxu0 %v268
      %400 = vmatpush1.msra.mxu0 %v267
      %401 = vmatprep.subr.mxu0 %v270
      %402 = vmatpush1.msra.mxu0 %v269
      %403 = vmatprep.subr.mxu0 %v272
      %404 = vmatpush1.msra.mxu0 %v271
      %405 = vmatprep.subr.mxu0 0.0
      %406 = vmatpush1.msra.mxu0 0.0
      %407 = vmatprep.subr.mxu0 0.0
      %408 = vmatpush1.msra.mxu0 0.0
      %409 = vmatprep.subr.mxu0 0.0
      %410 = vmatpush1.msra.mxu0 0.0
      %411 = vmatprep.subr.mxu0 0.0
      %412 = vmatpush1.msra.mxu0 0.0
      %413 = vmatprep.subr.mxu0 0.0
      %414 = vmatpush1.msra.mxu0 0.0
      %415 = vmatprep.subr.mxu0 0.0
      %416 = vmatpush1.msra.mxu0 0.0
      %417 = vmatprep.subr.mxu0 0.0
      %418 = vmatpush1.msra.mxu0 0.0
      %419 = vmatprep.subr.mxu0 0.0
      %420 = vmatpush1.msra.mxu0 0.0
      %421 = vmatprep.subr.mxu0 0.0
      %422 = vmatpush1.msra.mxu0 0.0
      %423 = vmatprep.subr.mxu0 0.0
      %424 = vmatpush1.msra.mxu0 0.0
      %425 = vmatprep.subr.mxu0 0.0
      %426 = vmatpush1.msra.mxu0 0.0
      %427 = vmatprep.subr.mxu0 0.0
      %428 = vmatpush1.msra.mxu0 0.0
      %429 = vmatprep.subr.mxu0 0.0
      %430 = vmatpush1.msra.mxu0 0.0
      %431 = vmatprep.subr.mxu0 0.0
      %432 = vmatpush1.msra.mxu0 0.0
      %433 = vmatprep.subr.mxu0 0.0
      %434 = vmatpush1.msra.mxu0 0.0
      %435 = vmatprep.subr.mxu0 0.0
      %436 = vmatpush1.msra.mxu0 0.0
      %437 = vmatprep.subr.mxu0 0.0
      %438 = vmatpush1.msra.mxu0 0.0
      %439 = vmatprep.subr.mxu0 0.0
      %440 = vmatpush1.msra.mxu0 0.0
      %441 = vmatprep.subr.mxu0 0.0
      %442 = vmatpush1.msra.mxu0 0.0
      %443 = vmatprep.subr.mxu0 0.0
      %444 = vmatpush1.msra.mxu0 0.0
      %445 = vmatprep.subr.mxu0 0.0
      %446 = vmatpush1.msra.mxu0 0.0
      %447 = vmatprep.subr.mxu0 0.0
      %448 = vmatpush1.msra.mxu0 0.0
      %449 = vmatprep.subr.mxu0 0.0
      %450 = vmatpush1.msra.mxu0 0.0
      %451 = vmatprep.mubr.f32.mxu0 0.0
      %452 = vmatmul.mubr.f32.gmra.mrb[0].mxu0 %v383
      %v453 = vpop.f32.mrb[0].mxu0
      %v454 = vadd.f32 %v373, %v453
      %v455 = vpop.f32.mrb[0].mxu0
      %v456 = vadd.f32 %v375, %v455
      %457 = vmatprep.mubr.f32.mxu0 0.0
      %458 = vmatmul.mubr.f32.gmra.mrb[0].mxu0 %v385
      %v459 = vpop.f32.mrb[0].mxu0
      %v460 = vadd.f32 %v379, %v459
      %v461 = vpop.f32.mrb[0].mxu0
      %v462 = vadd.f32 %v381, %v461
      %463 = vdwg.mxu0
      %s464 = scalar_lea.vmem %s1, 288
      %v465 = vld [vmem:[%s464] sm:$0xff]
      %v466 = vld [vmem:[%s464 + $0x8] sm:$0xff]
      %v467 = vld [vmem:[%s464 + $0x10] sm:$0xff]
      %v468 = vld [vmem:[%s464 + $0x18] sm:$0xff]
      %v469 = vld [vmem:[%s464 + $0x20] sm:$0xff]
      %v470 = vld [vmem:[%s464 + $0x28] sm:$0xff]
      %v471 = vld [vmem:[%s464 + $0x30] sm:$0xff]
      %v472 = vld [vmem:[%s464 + $0x38] sm:$0xff]
      %v473 = vld [vmem:[%s464 + $0x40] sm:$0xff]
      %v474 = vld [vmem:[%s464 + $0x48] sm:$0xff]
      %v475 = vld [vmem:[%s464 + $0x50] sm:$0xff]
      %v476 = vld [vmem:[%s464 + $0x58] sm:$0xff]
      %v477 = vld [vmem:[%s464 + $0x60] sm:$0xff]
      %v478 = vld [vmem:[%s464 + $0x68] sm:$0xff]
      %v479 = vld [vmem:[%s464 + $0x70] sm:$0xff]
      %v480 = vld [vmem:[%s464 + $0x78] sm:$0xff]
      %v481 = vld [vmem:[%s464 + $0x80] sm:$0xff]
      %v482 = vld [vmem:[%s464 + $0x88] sm:$0xff]
      %vm483 = vcmask 1045504
      %v484 = vrot.slane %v252, 2
      %v485 = vrot.slane %v253, 2
      %v486 = vsel %vm483, %v484, %v485
      %v487 = vrot.slane %v254, 2
      %v488 = vsel %vm483, %v485, %v487
      %v489 = vsel %vm301, %v486, 0
      %v491 = vsel %vm301, %v488, 0
      %493 = vmatprep.subr.mxu0 %v466
      %494 = vmatpush1.msra.mxu0 %v465
      %495 = vmatprep.subr.mxu0 %v468
      %496 = vmatpush1.msra.mxu0 %v467
      %497 = vmatprep.subr.mxu0 %v470
      %498 = vmatpush1.msra.mxu0 %v469
      %499 = vmatprep.subr.mxu0 %v472
      %500 = vmatpush1.msra.mxu0 %v471
      %501 = vmatprep.subr.mxu0 %v474
      %502 = vmatpush1.msra.mxu0 %v473
      %503 = vmatprep.subr.mxu0 %v476
      %504 = vmatpush1.msra.mxu0 %v475
      %505 = vmatprep.subr.mxu0 %v478
      %506 = vmatpush1.msra.mxu0 %v477
      %507 = vmatprep.subr.mxu0 %v480
      %508 = vmatpush1.msra.mxu0 %v479
      %509 = vmatprep.subr.mxu0 %v482
      %510 = vmatpush1.msra.mxu0 %v481
      %511 = vmatprep.subr.mxu0 0.0
      %512 = vmatpush1.msra.mxu0 0.0
      %513 = vmatprep.subr.mxu0 0.0
      %514 = vmatpush1.msra.mxu0 0.0
      %515 = vmatprep.subr.mxu0 0.0
      %516 = vmatpush1.msra.mxu0 0.0
      %517 = vmatprep.subr.mxu0 0.0
      %518 = vmatpush1.msra.mxu0 0.0
      %519 = vmatprep.subr.mxu0 0.0
      %520 = vmatpush1.msra.mxu0 0.0
      %521 = vmatprep.subr.mxu0 0.0
      %522 = vmatpush1.msra.mxu0 0.0
      %523 = vmatprep.subr.mxu0 0.0
      %524 = vmatpush1.msra.mxu0 0.0
      %525 = vmatprep.subr.mxu0 0.0
      %526 = vmatpush1.msra.mxu0 0.0
      %527 = vmatprep.subr.mxu0 0.0
      %528 = vmatpush1.msra.mxu0 0.0
      %529 = vmatprep.subr.mxu0 0.0
      %530 = vmatpush1.msra.mxu0 0.0
      %531 = vmatprep.subr.mxu0 0.0
      %532 = vmatpush1.msra.mxu0 0.0
      %533 = vmatprep.subr.mxu0 0.0
      %534 = vmatpush1.msra.mxu0 0.0
      %535 = vmatprep.subr.mxu0 0.0
      %536 = vmatpush1.msra.mxu0 0.0
      %537 = vmatprep.subr.mxu0 0.0
      %538 = vmatpush1.msra.mxu0 0.0
      %539 = vmatprep.subr.mxu0 0.0
      %540 = vmatpush1.msra.mxu0 0.0
      %541 = vmatprep.subr.mxu0 0.0
      %542 = vmatpush1.msra.mxu0 0.0
      %543 = vmatprep.subr.mxu0 0.0
      %544 = vmatpush1.msra.mxu0 0.0
      %545 = vmatprep.subr.mxu0 0.0
      %546 = vmatpush1.msra.mxu0 0.0
      %547 = vmatprep.subr.mxu0 0.0
      %548 = vmatpush1.msra.mxu0 0.0
      %549 = vmatprep.subr.mxu0 0.0
      %550 = vmatpush1.msra.mxu0 0.0
      %551 = vmatprep.subr.mxu0 0.0
      %552 = vmatpush1.msra.mxu0 0.0
      %553 = vmatprep.subr.mxu0 0.0
      %554 = vmatpush1.msra.mxu0 0.0
      %555 = vmatprep.subr.mxu0 0.0
      %556 = vmatpush1.msra.mxu0 0.0
      %557 = vmatprep.mubr.f32.mxu0 0.0
      %558 = vmatmul.mubr.f32.gmra.mrb[0].mxu0 %v489
      %v559 = vpop.f32.mrb[0].mxu0
      %v560 = vadd.f32 0.0, %v559
      %v561 = vpop.f32.mrb[0].mxu0
      %v562 = vadd.f32 0.0, %v561
      %563 = vmatprep.mubr.f32.mxu0 0.0
      %564 = vmatmul.mubr.f32.gmra.mrb[0].mxu0 %v491
      %v565 = vpop.f32.mrb[0].mxu0
      %v566 = vadd.f32 0.0, %v565
      %v567 = vpop.f32.mrb[0].mxu0
      %v568 = vadd.f32 0.0, %v567
      %569 = vdwg.mxu0
      %v570 = vadd.f32 %v454, %v560
      %v571 = vadd.f32 %v456, %v562
      %v572 = vadd.f32 %v460, %v566
      %v573 = vadd.f32 %v462, %v568
      %v574 = vld [vmem:[%s2] sm:$0x3]
      %v576 = vlaneseq
      %v577 = vshrl.u32 %v576, 7
      %v578 = vsub.s32 0, %v577
      %v579 = vrot.slane %v574, %v578
      %v580 = vlaneseq
      %v581 = vshrl.u32 %v580, 7
      %v582 = vsub.s32 1, %v581
      %v583 = vrot.slane %v574, %v582
      %v586 = vadd.f32 %v570, %v579
      %v587 = vadd.f32 %v571, %v583
      %v588 = vadd.f32 %v572, %v579
      %v589 = vadd.f32 %v573, %v583
      %v590 = vmax.f32 %v586, 0.0
      %v591 = vmax.f32 %v587, 0.0
      %v592 = vmax.f32 %v588, 0.0
      %v593 = vmax.f32 %v589, 0.0
      %v594 = vlaneseq
      %vm595 = vcmp.ge.s32.totalorder %v594, 0
      %vm596 = vcmp.lt.s32.totalorder %v594, 144
      %vm597 = vmand %vm595, %vm596
      %598 = vst.msk [vmem:[#allocation2] ss:$8 sm:$0x3] %vm597, 0.0
      %599 = vst.msk [vmem:[#allocation2] ss:$8 sm:$0x0] %vm597, 0.0
      %vm604 = vcmask 1040384
      %v605 = vrot.slane %v590, 7
      %v606 = vrot.slane %v591, 7
      %v607 = vrot.slane %v592, 7
      %v608 = vsel %vm604, %v605, %v607
      %v609 = vrot.slane %v593, 7
      %v610 = vsel %vm604, %v606, %v609
      %617 = vst [vmem:[#allocation2] sm:$0xfe] %v605
      %vm618 = vcmask 130049
      %619 = vst.msk [vmem:[#allocation2 + $0x8] sm:$0xfe] %vm618, %v606
      %620 = vst [vmem:[#allocation2 + $0x10] sm:$0xff] %v608
      %vm621 = vcmask 130048
      %622 = vst.msk [vmem:[#allocation2 + $0x18] sm:$0xff] %vm621, %v610
      %623 = vst [vmem:[#allocation2 + $0x20] sm:$0x1] %v607
      %vm624 = vcmask 122880
      %625 = vst.msk [vmem:[#allocation2 + $0x28] sm:$0x1] %vm624, %v609
      %s626 = scalar_lea.vmem [#allocation2], 33
      %627 = vst.msk [vmem:[%s626] ss:$8 sm:$0x3] %vm597, 0.0
      %628 = vst.msk [vmem:[%s626] ss:$8 sm:$0x0] %vm597, 0.0
      %v629 = vld [vmem:[%s4] sm:$0xff]
      %v630 = vld [vmem:[%s4 + $0x8] sm:$0xff]
      %v631 = vld [vmem:[%s4 + $0x10] sm:$0xff]
      %v632 = vld [vmem:[%s4 + $0x18] sm:$0xff]
      %v633 = vld [vmem:[%s4 + $0x20] sm:$0xff]
      %v634 = vld [vmem:[%s4 + $0x28] sm:$0xff]
      %v635 = vld [vmem:[%s4 + $0x30] sm:$0xff]
      %v636 = vld [vmem:[%s4 + $0x38] sm:$0xff]
      %v637 = vld [vmem:[%s4 + $0x40] sm:$0xff]
      %638 = vmatprep.subr.mxu0 0.0
      %639 = vmatpush1.msra.mxu0 %v629
      %640 = vmatprep.subr.mxu0 0.0
      %641 = vmatpush1.msra.mxu0 %v630
      %642 = vmatprep.subr.mxu0 0.0
      %643 = vmatpush1.msra.mxu0 %v631
      %644 = vmatprep.subr.mxu0 0.0
      %645 = vmatpush1.msra.mxu0 %v632
      %646 = vmatprep.subr.mxu0 0.0
      %647 = vmatpush1.msra.mxu0 %v633
      %648 = vmatprep.subr.mxu0 0.0
      %649 = vmatpush1.msra.mxu0 %v634
      %650 = vmatprep.subr.mxu0 0.0
      %651 = vmatpush1.msra.mxu0 %v635
      %652 = vmatprep.subr.mxu0 0.0
      %653 = vmatpush1.msra.mxu0 %v636
      %654 = vmatprep.subr.mxu0 0.0
      %655 = vmatpush1.msra.mxu0 %v637
      %656 = vmatprep.subr.mxu0 0.0
      %657 = vmatpush1.msra.mxu0 0.0
      %658 = vmatprep.subr.mxu0 0.0
      %659 = vmatpush1.msra.mxu0 0.0
      %660 = vmatprep.subr.mxu0 0.0
      %661 = vmatpush1.msra.mxu0 0.0
      %662 = vmatprep.subr.mxu0 0.0
      %663 = vmatpush1.msra.mxu0 0.0
      %664 = vmatprep.subr.mxu0 0.0
      %665 = vmatpush1.msra.mxu0 0.0
      %666 = vmatprep.subr.mxu0 0.0
      %667 = vmatpush1.msra.mxu0 0.0
      %668 = vmatprep.subr.mxu0 0.0
      %669 = vmatpush1.msra.mxu0 0.0
      %670 = vmatprep.subr.mxu0 0.0
      %671 = vmatpush1.msra.mxu0 0.0
      %672 = vmatprep.subr.mxu0 0.0
      %673 = vmatpush1.msra.mxu0 0.0
      %674 = vmatprep.subr.mxu0 0.0
      %675 = vmatpush1.msra.mxu0 0.0
      %676 = vmatprep.subr.mxu0 0.0
      %677 = vmatpush1.msra.mxu0 0.0
      %678 = vmatprep.subr.mxu0 0.0
      %679 = vmatpush1.msra.mxu0 0.0
      %680 = vmatprep.subr.mxu0 0.0
      %681 = vmatpush1.msra.mxu0 0.0
      %682 = vmatprep.subr.mxu0 0.0
      %683 = vmatpush1.msra.mxu0 0.0
      %684 = vmatprep.subr.mxu0 0.0
      %685 = vmatpush1.msra.mxu0 0.0
      %686 = vmatprep.subr.mxu0 0.0
      %687 = vmatpush1.msra.mxu0 0.0
      %688 = vmatprep.subr.mxu0 0.0
      %689 = vmatpush1.msra.mxu0 0.0
      %690 = vmatprep.subr.mxu0 0.0
      %691 = vmatpush1.msra.mxu0 0.0
      %692 = vmatprep.subr.mxu0 0.0
      %693 = vmatpush1.msra.mxu0 0.0
      %694 = vmatprep.subr.mxu0 0.0
      %695 = vmatpush1.msra.mxu0 0.0
      %696 = vmatprep.subr.mxu0 0.0
      %697 = vmatpush1.msra.mxu0 0.0
      %698 = vmatprep.subr.mxu0 0.0
      %699 = vmatpush1.msra.mxu0 0.0
      %700 = vmatprep.subr.mxu0 0.0
      %701 = vmatpush1.msra.mxu0 0.0
      %702 = vmatprep.mubr.f32.mxu0 0.0
      %703 = vmatmul.mubr.f32.gmra.mrb[0].mxu0 %v302
      %v704 = vpop.f32.mrb[0].mxu0
      %v705 = vadd.f32 0.0, %v704
      %v706 = vpop.f32.mrb[0].mxu0
      %707 = vmatprep.mubr.f32.mxu0 0.0
      %708 = vmatmul.mubr.f32.gmra.mrb[0].mxu0 %v304
      %v709 = vpop.f32.mrb[0].mxu0
      %v710 = vadd.f32 0.0, %v709
      %v711 = vpop.f32.mrb[0].mxu0
      %712 = vdwg.mxu0
      %v713 = vld [vmem:[#allocation2] sm:$0xff]
      %v714 = vld [vmem:[#allocation2 + $0x8] sm:$0xff]
      %v715 = vld [vmem:[#allocation2 + $0x10] sm:$0xff]
      %v716 = vld [vmem:[#allocation2 + $0x18] sm:$0xff]
      %v717 = vld [vmem:[#allocation2 + $0x20] sm:$0x3]
      %v718 = vld [vmem:[#allocation2 + $0x28] sm:$0x3]
      %v719 = vld [vmem:[%s3] sm:$0xff]
      %v720 = vld [vmem:[%s3 + $0x8] sm:$0xff]
      %v721 = vld [vmem:[%s3 + $0x10] sm:$0xff]
      %v722 = vld [vmem:[%s3 + $0x18] sm:$0xff]
      %v723 = vld [vmem:[%s3 + $0x20] sm:$0xff]
      %v724 = vld [vmem:[%s3 + $0x28] sm:$0xff]
      %v725 = vld [vmem:[%s3 + $0x30] sm:$0xff]
      %v726 = vld [vmem:[%s3 + $0x38] sm:$0xff]
      %v727 = vld [vmem:[%s3 + $0x40] sm:$0xff]
      %v728 = vld [vmem:[%s3 + $0x48] sm:$0xff]
      %v729 = vld [vmem:[%s3 + $0x50] sm:$0xff]
      %v730 = vld [vmem:[%s3 + $0x58] sm:$0xff]
      %v731 = vld [vmem:[%s3 + $0x60] sm:$0xff]
      %v732 = vld [vmem:[%s3 + $0x68] sm:$0xff]
      %v733 = vld [vmem:[%s3 + $0x70] sm:$0xff]
      %v734 = vld [vmem:[%s3 + $0x78] sm:$0xff]
      %v735 = vld [vmem:[%s3 + $0x80] sm:$0xff]
      %v736 = vld [vmem:[%s3 + $0x88] sm:$0xff]
      %s737 = scalar_lea.vmem %s3, 144
      %v738 = vld [vmem:[%s737] sm:$0xff]
      %v739 = vld [vmem:[%s737 + $0x8] sm:$0xff]
      %v740 = vld [vmem:[%s737 + $0x10] sm:$0xff]
      %v741 = vld [vmem:[%s737 + $0x18] sm:$0xff]
      %v742 = vld [vmem:[%s737 + $0x20] sm:$0xff]
      %v743 = vld [vmem:[%s737 + $0x28] sm:$0xff]
      %v744 = vld [vmem:[%s737 + $0x30] sm:$0xff]
      %v745 = vld [vmem:[%s737 + $0x38] sm:$0xff]
      %v746 = vld [vmem:[%s737 + $0x40] sm:$0xff]
      %v747 = vld [vmem:[%s737 + $0x48] sm:$0xff]
      %v748 = vld [vmem:[%s737 + $0x50] sm:$0xff]
      %v749 = vld [vmem:[%s737 + $0x58] sm:$0xff]
      %v750 = vld [vmem:[%s737 + $0x60] sm:$0xff]
      %v751 = vld [vmem:[%s737 + $0x68] sm:$0xff]
      %v752 = vld [vmem:[%s737 + $0x70] sm:$0xff]
      %v753 = vld [vmem:[%s737 + $0x78] sm:$0xff]
      %v754 = vld [vmem:[%s737 + $0x80] sm:$0xff]
      %v755 = vld [vmem:[%s737 + $0x88] sm:$0xff]
      %v762 = vrot.slane %v713, 1
      %v763 = vrot.slane %v715, 1
      %v764 = vsel %vm295, %v762, %v763
      %v765 = vrot.slane %v714, 1
      %v766 = vrot.slane %v716, 1
      %v767 = vsel %vm295, %v765, %v766
      %v768 = vrot.slane %v717, 1
      %v769 = vsel %vm295, %v763, %v768
      %v770 = vrot.slane %v718, 1
      %v771 = vsel %vm295, %v766, %v770
      %v774 = vsel %vm621, %v767, 0
      %v776 = vsel %vm621, %v771, 0
      %778 = vmatprep.subr.mxu0 0.0
      %779 = vmatpush1.msra.mxu0 %v738
      %780 = vmatprep.subr.mxu0 0.0
      %781 = vmatpush1.msra.mxu0 %v739
      %782 = vmatprep.subr.mxu0 0.0
      %783 = vmatpush1.msra.mxu0 %v740
      %784 = vmatprep.subr.mxu0 0.0
      %785 = vmatpush1.msra.mxu0 %v741
      %786 = vmatprep.subr.mxu0 0.0
      %787 = vmatpush1.msra.mxu0 %v742
      %788 = vmatprep.subr.mxu0 0.0
      %789 = vmatpush1.msra.mxu0 %v743
      %790 = vmatprep.subr.mxu0 0.0
      %791 = vmatpush1.msra.mxu0 %v744
      %792 = vmatprep.subr.mxu0 0.0
      %793 = vmatpush1.msra.mxu0 %v745
      %794 = vmatprep.subr.mxu0 0.0
      %795 = vmatpush1.msra.mxu0 %v746
      %796 = vmatprep.subr.mxu0 0.0
      %797 = vmatpush1.msra.mxu0 %v747
      %798 = vmatprep.subr.mxu0 0.0
      %799 = vmatpush1.msra.mxu0 %v748
      %800 = vmatprep.subr.mxu0 0.0
      %801 = vmatpush1.msra.mxu0 %v749
      %802 = vmatprep.subr.mxu0 0.0
      %803 = vmatpush1.msra.mxu0 %v750
      %804 = vmatprep.subr.mxu0 0.0
      %805 = vmatpush1.msra.mxu0 %v751
      %806 = vmatprep.subr.mxu0 0.0
      %807 = vmatpush1.msra.mxu0 %v752
      %808 = vmatprep.subr.mxu0 0.0
      %809 = vmatpush1.msra.mxu0 %v753
      %810 = vmatprep.subr.mxu0 0.0
      %811 = vmatpush1.msra.mxu0 %v754
      %812 = vmatprep.subr.mxu0 0.0
      %813 = vmatpush1.msra.mxu0 %v755
      %814 = vmatprep.subr.mxu0 0.0
      %815 = vmatpush1.msra.mxu0 0.0
      %816 = vmatprep.subr.mxu0 0.0
      %817 = vmatpush1.msra.mxu0 0.0
      %818 = vmatprep.subr.mxu0 0.0
      %819 = vmatpush1.msra.mxu0 0.0
      %820 = vmatprep.subr.mxu0 0.0
      %821 = vmatpush1.msra.mxu0 0.0
      %822 = vmatprep.subr.mxu0 0.0
      %823 = vmatpush1.msra.mxu0 0.0
      %824 = vmatprep.subr.mxu0 0.0
      %825 = vmatpush1.msra.mxu0 0.0
      %826 = vmatprep.subr.mxu0 0.0
      %827 = vmatpush1.msra.mxu0 0.0
      %828 = vmatprep.subr.mxu0 0.0
      %829 = vmatpush1.msra.mxu0 0.0
      %830 = vmatprep.subr.mxu0 0.0
      %831 = vmatpush1.msra.mxu0 0.0
      %832 = vmatprep.subr.mxu0 0.0
      %833 = vmatpush1.msra.mxu0 0.0
      %834 = vmatprep.subr.mxu0 0.0
      %835 = vmatpush1.msra.mxu0 0.0
      %836 = vmatprep.subr.mxu0 0.0
      %837 = vmatpush1.msra.mxu0 0.0
      %838 = vmatprep.subr.mxu0 0.0
      %839 = vmatpush1.msra.mxu0 0.0
      %840 = vmatprep.subr.mxu0 0.0
      %841 = vmatpush1.msra.mxu0 0.0
      %842 = vmatprep.mubr.f32.mxu0 %v774
      %843 = vmatmul.mubr.f32.gmra.mrb[0].mxu0 %v764
      %v844 = vpop.f32.mrb[0].mxu0
      %v845 = vadd.f32 0.0, %v844
      %v846 = vpop.f32.mrb[0].mxu0
      %847 = vmatprep.mubr.f32.mxu0 %v776
      %848 = vmatmul.mubr.f32.gmra.mrb[0].mxu0 %v769
      %v849 = vpop.f32.mrb[0].mxu0
      %v850 = vadd.f32 0.0, %v849
      %v851 = vpop.f32.mrb[0].mxu0
      %852 = vdwg.mxu0
      %v853 = vsel %vm621, %v714, 0
      %v855 = vsel %vm621, %v716, 0
      %857 = vmatprep.subr.mxu0 0.0
      %858 = vmatpush1.msra.mxu0 %v719
      %859 = vmatprep.subr.mxu0 0.0
      %860 = vmatpush1.msra.mxu0 %v720
      %861 = vmatprep.subr.mxu0 0.0
      %862 = vmatpush1.msra.mxu0 %v721
      %863 = vmatprep.subr.mxu0 0.0
      %864 = vmatpush1.msra.mxu0 %v722
      %865 = vmatprep.subr.mxu0 0.0
      %866 = vmatpush1.msra.mxu0 %v723
      %867 = vmatprep.subr.mxu0 0.0
      %868 = vmatpush1.msra.mxu0 %v724
      %869 = vmatprep.subr.mxu0 0.0
      %870 = vmatpush1.msra.mxu0 %v725
      %871 = vmatprep.subr.mxu0 0.0
      %872 = vmatpush1.msra.mxu0 %v726
      %873 = vmatprep.subr.mxu0 0.0
      %874 = vmatpush1.msra.mxu0 %v727
      %875 = vmatprep.subr.mxu0 0.0
      %876 = vmatpush1.msra.mxu0 %v728
      %877 = vmatprep.subr.mxu0 0.0
      %878 = vmatpush1.msra.mxu0 %v729
      %879 = vmatprep.subr.mxu0 0.0
      %880 = vmatpush1.msra.mxu0 %v730
      %881 = vmatprep.subr.mxu0 0.0
      %882 = vmatpush1.msra.mxu0 %v731
      %883 = vmatprep.subr.mxu0 0.0
      %884 = vmatpush1.msra.mxu0 %v732
      %885 = vmatprep.subr.mxu0 0.0
      %886 = vmatpush1.msra.mxu0 %v733
      %887 = vmatprep.subr.mxu0 0.0
      %888 = vmatpush1.msra.mxu0 %v734
      %889 = vmatprep.subr.mxu0 0.0
      %890 = vmatpush1.msra.mxu0 %v735
      %891 = vmatprep.subr.mxu0 0.0
      %892 = vmatpush1.msra.mxu0 %v736
      %893 = vmatprep.subr.mxu0 0.0
      %894 = vmatpush1.msra.mxu0 0.0
      %895 = vmatprep.subr.mxu0 0.0
      %896 = vmatpush1.msra.mxu0 0.0
      %897 = vmatprep.subr.mxu0 0.0
      %898 = vmatpush1.msra.mxu0 0.0
      %899 = vmatprep.subr.mxu0 0.0
      %900 = vmatpush1.msra.mxu0 0.0
      %901 = vmatprep.subr.mxu0 0.0
      %902 = vmatpush1.msra.mxu0 0.0
      %903 = vmatprep.subr.mxu0 0.0
      %904 = vmatpush1.msra.mxu0 0.0
      %905 = vmatprep.subr.mxu0 0.0
      %906 = vmatpush1.msra.mxu0 0.0
      %907 = vmatprep.subr.mxu0 0.0
      %908 = vmatpush1.msra.mxu0 0.0
      %909 = vmatprep.subr.mxu0 0.0
      %910 = vmatpush1.msra.mxu0 0.0
      %911 = vmatprep.subr.mxu0 0.0
      %912 = vmatpush1.msra.mxu0 0.0
      %913 = vmatprep.subr.mxu0 0.0
      %914 = vmatpush1.msra.mxu0 0.0
      %915 = vmatprep.subr.mxu0 0.0
      %916 = vmatpush1.msra.mxu0 0.0
      %917 = vmatprep.subr.mxu0 0.0
      %918 = vmatpush1.msra.mxu0 0.0
      %919 = vmatprep.subr.mxu0 0.0
      %920 = vmatpush1.msra.mxu0 0.0
      %921 = vmatprep.mubr.f32.mxu0 %v853
      %922 = vmatmul.mubr.f32.gmra.mrb[0].mxu0 %v713
      %v923 = vpop.f32.mrb[0].mxu0
      %v924 = vadd.f32 %v845, %v923
      %v925 = vpop.f32.mrb[0].mxu0
      %926 = vmatprep.mubr.f32.mxu0 %v855
      %927 = vmatmul.mubr.f32.gmra.mrb[0].mxu0 %v715
      %v928 = vpop.f32.mrb[0].mxu0
      %v929 = vadd.f32 %v850, %v928
      %v930 = vpop.f32.mrb[0].mxu0
      %931 = vdwg.mxu0
      %s932 = scalar_lea.vmem %s3, 288
      %v933 = vld [vmem:[%s932] sm:$0xff]
      %v934 = vld [vmem:[%s932 + $0x8] sm:$0xff]
      %v935 = vld [vmem:[%s932 + $0x10] sm:$0xff]
      %v936 = vld [vmem:[%s932 + $0x18] sm:$0xff]
      %v937 = vld [vmem:[%s932 + $0x20] sm:$0xff]
      %v938 = vld [vmem:[%s932 + $0x28] sm:$0xff]
      %v939 = vld [vmem:[%s932 + $0x30] sm:$0xff]
      %v940 = vld [vmem:[%s932 + $0x38] sm:$0xff]
      %v941 = vld [vmem:[%s932 + $0x40] sm:$0xff]
      %v942 = vld [vmem:[%s932 + $0x48] sm:$0xff]
      %v943 = vld [vmem:[%s932 + $0x50] sm:$0xff]
      %v944 = vld [vmem:[%s932 + $0x58] sm:$0xff]
      %v945 = vld [vmem:[%s932 + $0x60] sm:$0xff]
      %v946 = vld [vmem:[%s932 + $0x68] sm:$0xff]
      %v947 = vld [vmem:[%s932 + $0x70] sm:$0xff]
      %v948 = vld [vmem:[%s932 + $0x78] sm:$0xff]
      %v949 = vld [vmem:[%s932 + $0x80] sm:$0xff]
      %v950 = vld [vmem:[%s932 + $0x88] sm:$0xff]
      %v951 = vrot.slane %v713, 2
      %v952 = vrot.slane %v715, 2
      %v953 = vsel %vm483, %v951, %v952
      %v954 = vrot.slane %v714, 2
      %v955 = vrot.slane %v716, 2
      %v956 = vsel %vm483, %v954, %v955
      %v957 = vrot.slane %v717, 2
      %v958 = vsel %vm483, %v952, %v957
      %v959 = vrot.slane %v718, 2
      %v960 = vsel %vm483, %v955, %v959
      %v963 = vsel %vm621, %v956, 0
      %v965 = vsel %vm621, %v960, 0
      %967 = vmatprep.subr.mxu0 0.0
      %968 = vmatpush1.msra.mxu0 %v933
      %969 = vmatprep.subr.mxu0 0.0
      %970 = vmatpush1.msra.mxu0 %v934
      %971 = vmatprep.subr.mxu0 0.0
      %972 = vmatpush1.msra.mxu0 %v935
      %973 = vmatprep.subr.mxu0 0.0
      %974 = vmatpush1.msra.mxu0 %v936
      %975 = vmatprep.subr.mxu0 0.0
      %976 = vmatpush1.msra.mxu0 %v937
      %977 = vmatprep.subr.mxu0 0.0
      %978 = vmatpush1.msra.mxu0 %v938
      %979 = vmatprep.subr.mxu0 0.0
      %980 = vmatpush1.msra.mxu0 %v939
      %981 = vmatprep.subr.mxu0 0.0
      %982 = vmatpush1.msra.mxu0 %v940
      %983 = vmatprep.subr.mxu0 0.0
      %984 = vmatpush1.msra.mxu0 %v941
      %985 = vmatprep.subr.mxu0 0.0
      %986 = vmatpush1.msra.mxu0 %v942
      %987 = vmatprep.subr.mxu0 0.0
      %988 = vmatpush1.msra.mxu0 %v943
      %989 = vmatprep.subr.mxu0 0.0
      %990 = vmatpush1.msra.mxu0 %v944
      %991 = vmatprep.subr.mxu0 0.0
      %992 = vmatpush1.msra.mxu0 %v945
      %993 = vmatprep.subr.mxu0 0.0
      %994 = vmatpush1.msra.mxu0 %v946
      %995 = vmatprep.subr.mxu0 0.0
      %996 = vmatpush1.msra.mxu0 %v947
      %997 = vmatprep.subr.mxu0 0.0
      %998 = vmatpush1.msra.mxu0 %v948
      %999 = vmatprep.subr.mxu0 0.0
      %1000 = vmatpush1.msra.mxu0 %v949
      %1001 = vmatprep.subr.mxu0 0.0
      %1002 = vmatpush1.msra.mxu0 %v950
      %1003 = vmatprep.subr.mxu0 0.0
      %1004 = vmatpush1.msra.mxu0 0.0
      %1005 = vmatprep.subr.mxu0 0.0
      %1006 = vmatpush1.msra.mxu0 0.0
      %1007 = vmatprep.subr.mxu0 0.0
      %1008 = vmatpush1.msra.mxu0 0.0
      %1009 = vmatprep.subr.mxu0 0.0
      %1010 = vmatpush1.msra.mxu0 0.0
      %1011 = vmatprep.subr.mxu0 0.0
      %1012 = vmatpush1.msra.mxu0 0.0
      %1013 = vmatprep.subr.mxu0 0.0
      %1014 = vmatpush1.msra.mxu0 0.0
      %1015 = vmatprep.subr.mxu0 0.0
      %1016 = vmatpush1.msra.mxu0 0.0
      %1017 = vmatprep.subr.mxu0 0.0
      %1018 = vmatpush1.msra.mxu0 0.0
      %1019 = vmatprep.subr.mxu0 0.0
      %1020 = vmatpush1.msra.mxu0 0.0
      %1021 = vmatprep.subr.mxu0 0.0
      %1022 = vmatpush1.msra.mxu0 0.0
      %1023 = vmatprep.subr.mxu0 0.0
      %1024 = vmatpush1.msra.mxu0 0.0
      %1025 = vmatprep.subr.mxu0 0.0
      %1026 = vmatpush1.msra.mxu0 0.0
      %1027 = vmatprep.subr.mxu0 0.0
      %1028 = vmatpush1.msra.mxu0 0.0
      %1029 = vmatprep.subr.mxu0 0.0
      %1030 = vmatpush1.msra.mxu0 0.0
      %1031 = vmatprep.mubr.f32.mxu0 %v963
      %1032 = vmatmul.mubr.f32.gmra.mrb[0].mxu0 %v953
      %v1033 = vpop.f32.mrb[0].mxu0
      %v1034 = vadd.f32 0.0, %v1033
      %v1035 = vpop.f32.mrb[0].mxu0
      %1036 = vmatprep.mubr.f32.mxu0 %v965
      %1037 = vmatmul.mubr.f32.gmra.mrb[0].mxu0 %v958
      %v1038 = vpop.f32.mrb[0].mxu0
      %v1039 = vadd.f32 0.0, %v1038
      %v1040 = vpop.f32.mrb[0].mxu0
      %1041 = vdwg.mxu0
      %v1042 = vadd.f32 %v924, %v1034
      %v1043 = vadd.f32 %v929, %v1039
      %v1044 = vadd.f32 %v1042, %v705
      %v1045 = vadd.f32 %v1043, %v710
      %v1046 = vld [vmem:[%s5] sm:$0x1]
      %v1048 = vlaneseq
      %v1049 = vshrl.u32 %v1048, 7
      %v1050 = vsub.s32 0, %v1049
      %v1051 = vrot.slane %v1046, %v1050
      %v1053 = vadd.f32 %v1044, %v1051
      %v1054 = vadd.f32 %v1045, %v1051
      %v1055 = vmax.f32 %v1053, 0.0
      %v1056 = vmax.f32 %v1054, 0.0
      %1057 = vst [vmem:[%s251] sm:$0xff] %v1055
      %1058 = vst [vmem:[%s251 + $0x8] sm:$0xff] %v1056
      %p1059 = scmp.lt.s32.totalorder %s17, 1
      %s1060 = scalar_select %p1059, %s17, 1
      %s1061 = smul.addr %s1060, 2
      %s1062 = smul.addr %s1061, 8
      %s1063 = scalar_lea.vmem %s6, %s1062
      // Predicated region
      $region45: #{basic_block_rense_ensemble.1} parent=43 // pred_check
        %p1064 = pneg %p166
      $region46: #{basic_block_rense_ensemble.1} parent=43 // pred_check_branch
        %1066 = sbr.rel (%p1064) target = $region48
      $region47: #{basic_block_rense_ensemble.1} parent=43 // pred_region
        _
      $region48: #{basic_block_rense_ensemble.1} parent=43 // pred_fallthru
        _
    $region44: #{basic_block_rense_ensemble.1} parent=5 // pred_fallthru
      _
    %p1067 = scmp.le.s32.totalorder 2, %s12
    // Predicated region
    $region49: #{basic_block_rense_ensemble.1} parent=5 // pred_check
      %p1068 = pneg %p1067
    $region50: #{basic_block_rense_ensemble.1} parent=5 // pred_check_branch
      %1070 = sbr.rel (%p1068) target = $region52
    $region51: #{basic_block_rense_ensemble.1} parent=5 // pred_region
      %s1071 = ssub.s32 %s12, 2
      // Predicated region
      $region53: #{basic_block_rense_ensemble.1} parent=51 // pred_check
        %p1072 = pneg %p172
      $region54: #{basic_block_rense_ensemble.1} parent=51 // pred_check_branch
        %1074 = sbr.rel (%p1072) target = $region56
      $region55: #{basic_block_rense_ensemble.1} parent=51 // pred_region
        %p1075 = scmp.lt.s32.totalorder %s18, 1
        %s1076 = scalar_select %p1075, %s18, 1
        %s1077 = smul.addr %s1076, 2
        %s1078 = smul.addr %s1077, 8
        %s1079 = scalar_lea.vmem %s6, %s1078
      $region56: #{basic_block_rense_ensemble.1} parent=51 // pred_fallthru
        _
    $region52: #{basic_block_rense_ensemble.1} parent=5 // pred_fallthru
      _
  $region6: #{basic_block_rense_ensemble.1} parent=0 // loop_footer
    %s16 = sadd.s32 1, %s12
  $region7: #{basic_block_rense_ensemble.1} parent=0 // loop_footer_branch
    %11 = sbr.rel target = $region3
  $region8: #{basic_block_rense_ensemble.1} parent=0 // loop_exit
    _

</llo_original>
